<compile_context>
chip_gen: v7x
topology: tpu7x:2x2x1
jax: 0.10.0
libtpu: 0.0.40
codegen_flags: <defaults>
</compile_context>

<pallas_src>
import numpy as np
import jax
import jax.numpy as jnp
from jax.experimental import pallas as pl
from jax.experimental.pallas import tpu as pltpu


def _round_up(x, m):
    return ((x + m - 1) // m) * m


# --------------------------------------------------------------------------
# Kernel: one TemporalBlock, one (batch, L-tile) grid point per invocation.
# --------------------------------------------------------------------------
def _make_block_kernel(K, dilation, ltile, P, has_downsample, compute_dtype):
    """K: kernel_size, P: carried halo width (>= (K-1)*dilation, lane mult)."""
    H1 = (K - 1) * dilation          # receptive-field halo of a single conv

    def kernel(x_ref, w1_ref, b1_ref, w2_ref, b2_ref, *rest):
        if has_downsample:
            wd_ref, bd_ref, out_ref, xc_ref, hc_ref = rest
        else:
            out_ref, xc_ref, hc_ref = rest

        t = pl.program_id(1)

        # At the first L-tile of each batch row the carried halos ARE the
        # causal zero padding of conv1 (input) and conv2 (conv1 activation).
        @pl.when(t == 0)
        def _zero_carries():
            xc_ref[...] = jnp.zeros_like(xc_ref)
            hc_ref[...] = jnp.zeros_like(hc_ref)

        x_tile = x_ref[...]                                       # (Cin_p, Ltile)
        xp = jnp.concatenate([xc_ref[...], x_tile], axis=-1)      # (Cin_p, P+Ltile)
        # Stash this tile's right edge as the next tile's input halo.
        xc_ref[...] = x_tile[:, ltile - P:]
        xpc = xp.astype(compute_dtype)

        # ---- conv1 + ReLU : one fused (Cout, K*Cin) @ (K*Cin, Ltile) matmul
        s1 = jnp.concatenate(
            [xpc[:, P - H1 + j * dilation: P - H1 + j * dilation + ltile]
             for j in range(K)], axis=0)
        h = jnp.dot(w1_ref[...], s1,
                    preferred_element_type=jnp.float32) + b1_ref[...]
        h = jnp.maximum(h, 0.0)                                   # (Cout_p, Ltile)
        # TODO(synk): dropout is identity in inference mode; training-mode
        # dropout would need pltpu.prng_seed / prng_random_bits here.

        # ---- conv2 + ReLU : halo comes from the carried conv1 activations
        hp = jnp.concatenate([hc_ref[...], h], axis=-1)           # (Cout_p, P+Ltile)
        hc_ref[...] = h[:, ltile - P:]
        hpc = hp.astype(compute_dtype)
        s2 = jnp.concatenate(
            [hpc[:, P - H1 + j * dilation: P - H1 + j * dilation + ltile]
             for j in range(K)], axis=0)
        out = jnp.dot(w2_ref[...], s2,
                      preferred_element_type=jnp.float32) + b2_ref[...]
        out = jnp.maximum(out, 0.0)

        # ---- residual (optional 1x1 downsample) + final ReLU
        if has_downsample:
            res = jnp.dot(wd_ref[...], x_tile.astype(compute_dtype),
                          preferred_element_type=jnp.float32) + bd_ref[...]
        else:
            res = x_tile.astype(jnp.float32)
        out_ref[...] = jnp.maximum(out + res, 0.0).astype(out_ref.dtype)

    return kernel


def temporal_block(x, layer, *, kernel_size, ltile, compute_dtype):
    """One TemporalBlock. x: (B, Cin_p, Lpad) -> (B, Cout_p, Lpad)."""
    B, cin_p, lpad = x.shape
    cout_p = layer["w1f"].shape[0]
    dilation = layer["dilation"]
    H1 = (kernel_size - 1) * dilation
    P = _round_up(max(H1, 1), 128)          # carried halo width (lane multiple)
    assert P <= ltile, "L tile must cover the conv receptive-field halo"
    nt = lpad // ltile
    has_ds = layer["wdf"] is not None

    args = [x, layer["w1f"], layer["b1c"], layer["w2f"], layer["b2c"]]
    in_specs = [
        # Activation tile: batch squeezed, channels x L-tile (8,128 compliant).
        pl.BlockSpec((pl.Squeezed(), cin_p, ltile), lambda b, t: (b, 0, t)),
        # Weights / biases: constant index_map -> stay resident across the grid.
        pl.BlockSpec(layer["w1f"].shape, lambda b, t: (0, 0)),
        pl.BlockSpec(layer["b1c"].shape, lambda b, t: (0, 0)),
        pl.BlockSpec(layer["w2f"].shape, lambda b, t: (0, 0)),
        pl.BlockSpec(layer["b2c"].shape, lambda b, t: (0, 0)),
    ]
    if has_ds:
        args += [layer["wdf"], layer["bdc"]]
        in_specs += [
            pl.BlockSpec(layer["wdf"].shape, lambda b, t: (0, 0)),
            pl.BlockSpec(layer["bdc"].shape, lambda b, t: (0, 0)),
        ]

    kernel = _make_block_kernel(kernel_size, dilation, ltile, P, has_ds,
                                compute_dtype)

    grid_spec = pltpu.PrefetchScalarGridSpec(
        num_scalar_prefetch=0,
        grid=(B, nt),
        in_specs=in_specs,
        out_specs=pl.BlockSpec((pl.Squeezed(), cout_p, ltile),
                               lambda b, t: (b, 0, t)),
        scratch_shapes=[
            pltpu.VMEM((cin_p, P), x.dtype),        # input halo carry (conv1)
            pltpu.VMEM((cout_p, P), jnp.float32),   # conv1 activation halo (conv2)
        ],
    )
    return pl.pallas_call(
        kernel,
        out_shape=jax.ShapeDtypeStruct((B, cout_p, lpad), x.dtype),
        grid_spec=grid_spec,
        compiler_params=pltpu.CompilerParams(
            # B is independent -> megacore-parallel; the L-tile axis is
            # sequential because the halos are carried tile-to-tile.
            dimension_semantics=("parallel", "arbitrary"),
            vmem_limit_bytes=32 * 1024 * 1024,
        ),
    )(*args)


# --------------------------------------------------------------------------
# One-time parameter preparation (hoisted out of the forward pass).
# --------------------------------------------------------------------------
def init_tcn_params(key, num_inputs, num_channels, kernel_size):
    """Deterministic PyTorch-style (uniform +-1/sqrt(fan_in)) init."""
    def u(k, shape, fan_in):
        bound = 1.0 / np.sqrt(fan_in)
        return jax.random.uniform(k, shape, jnp.float32, -bound, bound)

    params = []
    for i, cout in enumerate(num_channels):
        cin = num_inputs if i == 0 else num_channels[i - 1]
        key, k1, k2, k3, k4, k5, k6 = jax.random.split(key, 7)
        params.append({
            "w1": u(k1, (cout, cin, kernel_size), cin * kernel_size),
            "b1": u(k2, (cout,), cin * kernel_size),
            "w2": u(k3, (cout, cout, kernel_size), cout * kernel_size),
            "b2": u(k4, (cout,), cout * kernel_size),
            "wd": u(k5, (cout, cin, 1), cin) if cin != cout else None,
            "bd": u(k6, (cout,), cin) if cin != cout else None,
            "dilation": 2 ** i,
        })
    return params


def prepare_tcn_params(params, kernel_size, compute_dtype=jnp.float32):
    """Pad channels to sublane multiples and build fused (Cout, K*Cin) slabs."""
    pad = 8 if compute_dtype == jnp.float32 else 16

    def pad2(a, r, c, dtype):
        return jnp.zeros((r, c), dtype).at[:a.shape[0], :a.shape[1]].set(
            a.astype(dtype))

    layers = []
    max_halo = 1
    for p in params:
        cout, cin, K = p["w1"].shape
        cin_p, cout_p = _round_up(cin, pad), _round_up(cout, pad)
        d = p["dilation"]
        max_halo = max(max_halo, (K - 1) * d)

        def fuse(w, cin_pad):        # (cout, ci, K) -> (cout_p, K*cin_pad)
            co, ci, k = w.shape
            slab = jnp.zeros((cout_p, k, cin_pad), compute_dtype)
            slab = slab.at[:co, :, :ci].set(
                jnp.transpose(w, (0, 2, 1)).astype(compute_dtype))
            return slab.reshape(cout_p, k * cin_pad)

        layer = {
            "w1f": fuse(p["w1"], cin_p),
            "b1c": pad2(p["b1"].reshape(cout, 1), cout_p, 1, jnp.float32),
            "w2f": fuse(p["w2"], cout_p),
            "b2c": pad2(p["b2"].reshape(cout, 1), cout_p, 1, jnp.float32),
            "wdf": None, "bdc": None,
            "dilation": d, "cin_p": cin_p, "cout_p": cout_p,
        }
        if p["wd"] is not None:
            layer["wdf"] = pad2(p["wd"][:, :, 0], cout_p, cin_p, compute_dtype)
            layer["bdc"] = pad2(p["bd"].reshape(cout, 1), cout_p, 1, jnp.float32)
        layers.append(layer)

    return {"layers": layers,
            "meta": {"kernel_size": kernel_size,
                     "max_halo": max_halo,
                     "out_channels": params[-1]["w1"].shape[0],
                     "compute_dtype": compute_dtype}}


def tcn_forward(x, prepared, *, max_ltile=512):
    """Full TCN forward. x: (B, C, L) -> (B, num_channels[-1], L)."""
    meta = prepared["meta"]
    layers = prepared["layers"]
    K = meta["kernel_size"]
    cdt = meta["compute_dtype"]
    B, C, L = x.shape

    min_tile = _round_up(max(meta["max_halo"], 1), 128)
    ltile = max(min(_round_up(L, 128), max_ltile), min_tile)
    lpad = _round_up(L, ltile)

    # Pad channels (sublane multiple) and L (lane multiple) ONCE for the whole
    # stack; padded channels stay exactly zero through every block and padded
    # L columns never affect real columns (causal convs), so one final slice
    # recovers the exact result.
    h = jnp.zeros((B, layers[0]["cin_p"], lpad), x.dtype).at[:, :C, :L].set(x)
    for layer in layers:
        h = temporal_block(h, layer, kernel_size=K, ltile=ltile,
                           compute_dtype=cdt)
    return h[:, :meta["out_channels"], :L]


# ------------------------- pure-JAX reference ------------------------------
def _ref_conv1d(x, w, b, dilation, padding):
    y = jax.lax.conv_general_dilated(
        x, w, window_strides=(1,), padding=[(padding, padding)],
        rhs_dilation=(dilation,), dimension_numbers=("NCH", "OIH", "NCH"),
        precision=jax.lax.Precision.HIGHEST)
    y = y + b[None, :, None]
    return y[:, :, :-padding] if padding > 0 else y


def tcn_reference(x, params, kernel_size):
    h = x
    for p in params:
        d = p["dilation"]
        pad = (kernel_size - 1) * d
        out = jax.nn.relu(_ref_conv1d(h, p["w1"], p["b1"], d, pad))
        out = jax.nn.relu(_ref_conv1d(out, p["w2"], p["b2"], d, pad))
        res = h if p["wd"] is None else _ref_conv1d(h, p["wd"], p["bd"], 1, 0)
        h = jax.nn.relu(out + res)
    return h


if __name__ == "__main__":
    key = jax.random.PRNGKey(0)
    kx, kp = jax.random.split(key)

    batch, num_inputs, seq_len = 2, 4, 16
    num_channels = [8, 8, 16]      # layer 1 has cin==cout -> no downsample path
    kernel_size = 2

    x = jax.random.normal(kx, (batch, num_inputs, seq_len), jnp.float32)
    params = init_tcn_params(kp, num_inputs, num_channels, kernel_size)
    # compute_dtype=jnp.bfloat16 halves MXU/DMA cost (f32 accumulation kept);
    # the self-test uses f32.
    prepared = prepare_tcn_params(params, kernel_size,
                                  compute_dtype=jnp.float32)

    fwd = jax.jit(lambda inp: tcn_forward(inp, prepared))
    out = jax.block_until_ready(fwd(x))

    ref = jax.block_until_ready(tcn_reference(x, params, kernel_size))
    assert out.shape == (batch, num_channels[-1], seq_len), out.shape
    # Tolerance leaves headroom for MXU f32 accumulation vs HIGHEST-precision
    # XLA conv reference; genuine logic bugs are orders of magnitude larger.
    np.testing.assert_allclose(np.asarray(out), np.asarray(ref),
                               rtol=1e-3, atol=1e-3)

    print("KERNEL_OK")
</pallas_src>

<mosaic_0001>
module attributes {stable_mosaic.version = 11 : i64} {
  func.func @kernel(%arg0: i32, %arg1: i32, %arg2: memref<1x8x128xf32, #tpu.memory_space<vmem>>, %arg3: memref<16x16xf32, #tpu.memory_space<vmem>>, %arg4: memref<16x1xf32, #tpu.memory_space<vmem>>, %arg5: memref<16x32xf32, #tpu.memory_space<vmem>>, %arg6: memref<16x1xf32, #tpu.memory_space<vmem>>, %arg7: memref<16x8xf32, #tpu.memory_space<vmem>>, %arg8: memref<16x1xf32, #tpu.memory_space<vmem>>, %arg9: memref<1x16x128xf32, #tpu.memory_space<vmem>>, %arg10: memref<8x128xf32, #tpu.memory_space<vmem>>, %arg11: memref<16x128xf32, #tpu.memory_space<vmem>>) attributes {dimension_semantics = [#tpu.dimension_semantics<parallel>, #tpu.dimension_semantics<arbitrary>], iteration_bounds = array<i64: 2, 1>, scalar_prefetch = 0 : i64, scratch_operands = 2 : i64, tpu.core_type = #tpu.core_type<tc>, window_params = [{transform_indices = @transform_0, window_bounds = array<i64: 1, 8, 128>}, {pipeline_mode = #tpu.pipeline_mode<synchronous>, transform_indices = @transform_1, window_bounds = array<i64: 16, 16>}, {pipeline_mode = #tpu.pipeline_mode<synchronous>, transform_indices = @transform_2, window_bounds = array<i64: 16, 1>}, {pipeline_mode = #tpu.pipeline_mode<synchronous>, transform_indices = @transform_3, window_bounds = array<i64: 16, 32>}, {pipeline_mode = #tpu.pipeline_mode<synchronous>, transform_indices = @transform_4, window_bounds = array<i64: 16, 1>}, {pipeline_mode = #tpu.pipeline_mode<synchronous>, transform_indices = @transform_5, window_bounds = array<i64: 16, 8>}, {pipeline_mode = #tpu.pipeline_mode<synchronous>, transform_indices = @transform_6, window_bounds = array<i64: 16, 1>}, {transform_indices = @transform_7, window_bounds = array<i64: 1, 16, 128>}]} {
    %c0_i32 = arith.constant 0 : i32
    %0 = arith.cmpi eq, %arg1, %c0_i32 : i32
    %1 = arith.extui %0 : i1 to i32
    %c0_i32_0 = arith.constant 0 : i32
    %2 = arith.cmpi ne, %1, %c0_i32_0 : i32
    scf.if %2 {
      %cst_31 = arith.constant 0.000000e+00 : f32
      %42 = vector.broadcast %cst_31 : f32 to vector<8x128xf32>
      %c0_32 = arith.constant 0 : index
      %c0_33 = arith.constant 0 : index
      %43 = vector.load %arg10[%c0_32, %c0_33] : memref<8x128xf32, #tpu.memory_space<vmem>>, vector<8x128xf32>
      tpu.vector_store %arg10[%c0_32, %c0_33], %42 {strides = array<i32>} : memref<8x128xf32, #tpu.memory_space<vmem>>, vector<8x128xf32>,
      %cst_34 = arith.constant 0.000000e+00 : f32
      %44 = vector.broadcast %cst_34 : f32 to vector<16x128xf32>
      %c0_35 = arith.constant 0 : index
      %c0_36 = arith.constant 0 : index
      %45 = vector.load %arg11[%c0_35, %c0_36] : memref<16x128xf32, #tpu.memory_space<vmem>>, vector<16x128xf32>
      tpu.vector_store %arg11[%c0_35, %c0_36], %44 {strides = array<i32>} : memref<16x128xf32, #tpu.memory_space<vmem>>, vector<16x128xf32>,
    } else {
    }
    %c0 = arith.constant 0 : index
    %c0_1 = arith.constant 0 : index
    %c0_2 = arith.constant 0 : index
    %3 = vector.load %arg2[%c0, %c0_1, %c0_2] : memref<1x8x128xf32, #tpu.memory_space<vmem>>, vector<1x8x128xf32>
    %4 = vector.shape_cast %3 : vector<1x8x128xf32> to vector<8x128xf32>
    %c0_3 = arith.constant 0 : index
    %c0_4 = arith.constant 0 : index
    %5 = vector.load %arg10[%c0_3, %c0_4] : memref<8x128xf32, #tpu.memory_space<vmem>>, vector<8x128xf32>
    %6 = tpu.concatenate %5, %4 in 1 : vector<8x128xf32>, vector<8x128xf32> -> vector<8x256xf32>
    %c0_5 = arith.constant 0 : index
    %c0_6 = arith.constant 0 : index
    %7 = vector.load %arg10[%c0_5, %c0_6] : memref<8x128xf32, #tpu.memory_space<vmem>>, vector<8x128xf32>
    tpu.vector_store %arg10[%c0_5, %c0_6], %4 {strides = array<i32>} : memref<8x128xf32, #tpu.memory_space<vmem>>, vector<8x128xf32>,
    %8 = vector.extract_strided_slice %6 {offsets = [0, 124], sizes = [8, 128], strides = [1, 1]} : vector<8x256xf32> to vector<8x128xf32>
    %9 = vector.extract_strided_slice %6 {offsets = [0, 128], sizes = [8, 128], strides = [1, 1]} : vector<8x256xf32> to vector<8x128xf32>
    %10 = tpu.concatenate %8, %9 in 0 : vector<8x128xf32>, vector<8x128xf32> -> vector<16x128xf32>
    %c0_7 = arith.constant 0 : index
    %c0_8 = arith.constant 0 : index
    %11 = vector.load %arg3[%c0_7, %c0_8] : memref<16x16xf32, #tpu.memory_space<vmem>>, vector<16x16xf32>
    %cst = arith.constant dense<0.000000e+00> : vector<16x128xf32>
    %12 = tpu.matmul %11, %10, %cst {dimension_numbers = #tpu.dot_dimension_numbers<[1], [0], [0], [1], [0, 0, 1, 1], [], []>} : vector<16x16xf32>, vector<16x128xf32>, vector<16x128xf32> -> vector<16x128xf32>
    %c0_9 = arith.constant 0 : index
    %c0_10 = arith.constant 0 : index
    %13 = vector.load %arg4[%c0_9, %c0_10] : memref<16x1xf32, #tpu.memory_space<vmem>>, vector<16x1xf32>
    %14 = vector.broadcast %13 : vector<16x1xf32> to vector<16x128xf32>
    %15 = arith.addf %12, %14 : vector<16x128xf32>
    %cst_11 = arith.constant 0.000000e+00 : f32
    %16 = vector.broadcast %cst_11 : f32 to vector<16x128xf32>
    %17 = arith.maximumf %15, %16 : vector<16x128xf32>
    %c0_12 = arith.constant 0 : index
    %c0_13 = arith.constant 0 : index
    %18 = vector.load %arg11[%c0_12, %c0_13] : memref<16x128xf32, #tpu.memory_space<vmem>>, vector<16x128xf32>
    %19 = tpu.concatenate %18, %17 in 1 : vector<16x128xf32>, vector<16x128xf32> -> vector<16x256xf32>
    %c0_14 = arith.constant 0 : index
    %c0_15 = arith.constant 0 : index
    %20 = vector.load %arg11[%c0_14, %c0_15] : memref<16x128xf32, #tpu.memory_space<vmem>>, vector<16x128xf32>
    tpu.vector_store %arg11[%c0_14, %c0_15], %17 {strides = array<i32>} : memref<16x128xf32, #tpu.memory_space<vmem>>, vector<16x128xf32>,
    %21 = vector.extract_strided_slice %19 {offsets = [0, 124], sizes = [16, 128], strides = [1, 1]} : vector<16x256xf32> to vector<16x128xf32>
    %22 = vector.extract_strided_slice %19 {offsets = [0, 128], sizes = [16, 128], strides = [1, 1]} : vector<16x256xf32> to vector<16x128xf32>
    %23 = tpu.concatenate %21, %22 in 0 : vector<16x128xf32>, vector<16x128xf32> -> vector<32x128xf32>
    %c0_16 = arith.constant 0 : index
    %c0_17 = arith.constant 0 : index
    %24 = vector.load %arg5[%c0_16, %c0_17] : memref<16x32xf32, #tpu.memory_space<vmem>>, vector<16x32xf32>
    %cst_18 = arith.constant dense<0.000000e+00> : vector<16x128xf32>
    %25 = tpu.matmul %24, %23, %cst_18 {dimension_numbers = #tpu.dot_dimension_numbers<[1], [0], [0], [1], [0, 0, 1, 1], [], []>} : vector<16x32xf32>, vector<32x128xf32>, vector<16x128xf32> -> vector<16x128xf32>
    %c0_19 = arith.constant 0 : index
    %c0_20 = arith.constant 0 : index
    %26 = vector.load %arg6[%c0_19, %c0_20] : memref<16x1xf32, #tpu.memory_space<vmem>>, vector<16x1xf32>
    %27 = vector.broadcast %26 : vector<16x1xf32> to vector<16x128xf32>
    %28 = arith.addf %25, %27 : vector<16x128xf32>
    %cst_21 = arith.constant 0.000000e+00 : f32
    %29 = vector.broadcast %cst_21 : f32 to vector<16x128xf32>
    %30 = arith.maximumf %28, %29 : vector<16x128xf32>
    %c0_22 = arith.constant 0 : index
    %c0_23 = arith.constant 0 : index
    %31 = vector.load %arg7[%c0_22, %c0_23] : memref<16x8xf32, #tpu.memory_space<vmem>>, vector<16x8xf32>
    %cst_24 = arith.constant dense<0.000000e+00> : vector<16x128xf32>
    %32 = tpu.matmul %31, %4, %cst_24 {dimension_numbers = #tpu.dot_dimension_numbers<[1], [0], [0], [1], [0, 0, 1, 1], [], []>} : vector<16x8xf32>, vector<8x128xf32>, vector<16x128xf32> -> vector<16x128xf32>
    %c0_25 = arith.constant 0 : index
    %c0_26 = arith.constant 0 : index
    %33 = vector.load %arg8[%c0_25, %c0_26] : memref<16x1xf32, #tpu.memory_space<vmem>>, vector<16x1xf32>
    %34 = vector.broadcast %33 : vector<16x1xf32> to vector<16x128xf32>
    %35 = arith.addf %32, %34 : vector<16x128xf32>
    %36 = arith.addf %30, %35 : vector<16x128xf32>
    %cst_27 = arith.constant 0.000000e+00 : f32
    %37 = vector.broadcast %cst_27 : f32 to vector<16x128xf32>
    %38 = arith.maximumf %36, %37 : vector<16x128xf32>
    %c0_28 = arith.constant 0 : index
    %c0_29 = arith.constant 0 : index
    %c0_30 = arith.constant 0 : index
    %39 = vector.load %arg9[%c0_28, %c0_29, %c0_30] : memref<1x16x128xf32, #tpu.memory_space<vmem>>, vector<1x16x128xf32>
    %40 = vector.shape_cast %39 : vector<1x16x128xf32> to vector<16x128xf32>
    %41 = vector.shape_cast %38 : vector<16x128xf32> to vector<1x16x128xf32>
    tpu.vector_store %arg9[%c0_28, %c0_29, %c0_30], %41 {strides = array<i32>} : memref<1x16x128xf32, #tpu.memory_space<vmem>>, vector<1x16x128xf32>,
    return
  }
  func.func @transform_0(%arg0: i32, %arg1: i32) -> (i32, i32, i32) {
    %c0_i32 = arith.constant 0 : i32
    %c0_i32_0 = arith.constant 0 : i32
    return %arg0, %c0_i32, %arg1 : i32, i32, i32
  }
  func.func @transform_1(%arg0: i32, %arg1: i32) -> (i32, i32) {
    %c0_i32 = arith.constant 0 : i32
    %c0_i32_0 = arith.constant 0 : i32
    %c0_i32_1 = arith.constant 0 : i32
    return %c0_i32, %c0_i32_0 : i32, i32
  }
  func.func @transform_2(%arg0: i32, %arg1: i32) -> (i32, i32) {
    %c0_i32 = arith.constant 0 : i32
    %c0_i32_0 = arith.constant 0 : i32
    %c0_i32_1 = arith.constant 0 : i32
    return %c0_i32, %c0_i32_0 : i32, i32
  }
  func.func @transform_3(%arg0: i32, %arg1: i32) -> (i32, i32) {
    %c0_i32 = arith.constant 0 : i32
    %c0_i32_0 = arith.constant 0 : i32
    %c0_i32_1 = arith.constant 0 : i32
    return %c0_i32, %c0_i32_0 : i32, i32
  }
  func.func @transform_4(%arg0: i32, %arg1: i32) -> (i32, i32) {
    %c0_i32 = arith.constant 0 : i32
    %c0_i32_0 = arith.constant 0 : i32
    %c0_i32_1 = arith.constant 0 : i32
    return %c0_i32, %c0_i32_0 : i32, i32
  }
  func.func @transform_5(%arg0: i32, %arg1: i32) -> (i32, i32) {
    %c0_i32 = arith.constant 0 : i32
    %c0_i32_0 = arith.constant 0 : i32
    %c0_i32_1 = arith.constant 0 : i32
    return %c0_i32, %c0_i32_0 : i32, i32
  }
  func.func @transform_6(%arg0: i32, %arg1: i32) -> (i32, i32) {
    %c0_i32 = arith.constant 0 : i32
    %c0_i32_0 = arith.constant 0 : i32
    %c0_i32_1 = arith.constant 0 : i32
    return %c0_i32, %c0_i32_0 : i32, i32
  }
  func.func @transform_7(%arg0: i32, %arg1: i32) -> (i32, i32, i32) {
    %c0_i32 = arith.constant 0 : i32
    %c0_i32_0 = arith.constant 0 : i32
    return %arg0, %c0_i32, %arg1 : i32, i32, i32
  }
}

module attributes {stable_mosaic.version = 11 : i64} {
  func.func @kernel(%arg0: i32, %arg1: i32, %arg2: memref<1x8x128xf32, #tpu.memory_space<vmem>>, %arg3: memref<8x16xf32, #tpu.memory_space<vmem>>, %arg4: memref<8x1xf32, #tpu.memory_space<vmem>>, %arg5: memref<8x16xf32, #tpu.memory_space<vmem>>, %arg6: memref<8x1xf32, #tpu.memory_space<vmem>>, %arg7: memref<8x8xf32, #tpu.memory_space<vmem>>, %arg8: memref<8x1xf32, #tpu.memory_space<vmem>>, %arg9: memref<1x8x128xf32, #tpu.memory_space<vmem>>, %arg10: memref<8x128xf32, #tpu.memory_space<vmem>>, %arg11: memref<8x128xf32, #tpu.memory_space<vmem>>) attributes {dimension_semantics = [#tpu.dimension_semantics<parallel>, #tpu.dimension_semantics<arbitrary>], iteration_bounds = array<i64: 2, 1>, scalar_prefetch = 0 : i64, scratch_operands = 2 : i64, tpu.core_type = #tpu.core_type<tc>, window_params = [{transform_indices = @transform_0, window_bounds = array<i64: 1, 8, 128>}, {pipeline_mode = #tpu.pipeline_mode<synchronous>, transform_indices = @transform_1, window_bounds = array<i64: 8, 16>}, {pipeline_mode = #tpu.pipeline_mode<synchronous>, transform_indices = @transform_2, window_bounds = array<i64: 8, 1>}, {pipeline_mode = #tpu.pipeline_mode<synchronous>, transform_indices = @transform_3, window_bounds = array<i64: 8, 16>}, {pipeline_mode = #tpu.pipeline_mode<synchronous>, transform_indices = @transform_4, window_bounds = array<i64: 8, 1>}, {pipeline_mode = #tpu.pipeline_mode<synchronous>, transform_indices = @transform_5, window_bounds = array<i64: 8, 8>}, {pipeline_mode = #tpu.pipeline_mode<synchronous>, transform_indices = @transform_6, window_bounds = array<i64: 8, 1>}, {transform_indices = @transform_7, window_bounds = array<i64: 1, 8, 128>}]} {
    %c0_i32 = arith.constant 0 : i32
    %0 = arith.cmpi eq, %arg1, %c0_i32 : i32
    %1 = arith.extui %0 : i1 to i32
    %c0_i32_0 = arith.constant 0 : i32
    %2 = arith.cmpi ne, %1, %c0_i32_0 : i32
    scf.if %2 {
      %cst_31 = arith.constant 0.000000e+00 : f32
      %42 = vector.broadcast %cst_31 : f32 to vector<8x128xf32>
      %c0_32 = arith.constant 0 : index
      %c0_33 = arith.constant 0 : index
      %43 = vector.load %arg10[%c0_32, %c0_33] : memref<8x128xf32, #tpu.memory_space<vmem>>, vector<8x128xf32>
      tpu.vector_store %arg10[%c0_32, %c0_33], %42 {strides = array<i32>} : memref<8x128xf32, #tpu.memory_space<vmem>>, vector<8x128xf32>,
      %cst_34 = arith.constant 0.000000e+00 : f32
      %44 = vector.broadcast %cst_34 : f32 to vector<8x128xf32>
      %c0_35 = arith.constant 0 : index
      %c0_36 = arith.constant 0 : index
      %45 = vector.load %arg11[%c0_35, %c0_36] : memref<8x128xf32, #tpu.memory_space<vmem>>, vector<8x128xf32>
      tpu.vector_store %arg11[%c0_35, %c0_36], %44 {strides = array<i32>} : memref<8x128xf32, #tpu.memory_space<vmem>>, vector<8x128xf32>,
    } else {
    }
    %c0 = arith.constant 0 : index
    %c0_1 = arith.constant 0 : index
    %c0_2 = arith.constant 0 : index
    %3 = vector.load %arg2[%c0, %c0_1, %c0_2] : memref<1x8x128xf32, #tpu.memory_space<vmem>>, vector<1x8x128xf32>
    %4 = vector.shape_cast %3 : vector<1x8x128xf32> to vector<8x128xf32>
    %c0_3 = arith.constant 0 : index
    %c0_4 = arith.constant 0 : index
    %5 = vector.load %arg10[%c0_3, %c0_4] : memref<8x128xf32, #tpu.memory_space<vmem>>, vector<8x128xf32>
    %6 = tpu.concatenate %5, %4 in 1 : vector<8x128xf32>, vector<8x128xf32> -> vector<8x256xf32>
    %c0_5 = arith.constant 0 : index
    %c0_6 = arith.constant 0 : index
    %7 = vector.load %arg10[%c0_5, %c0_6] : memref<8x128xf32, #tpu.memory_space<vmem>>, vector<8x128xf32>
    tpu.vector_store %arg10[%c0_5, %c0_6], %4 {strides = array<i32>} : memref<8x128xf32, #tpu.memory_space<vmem>>, vector<8x128xf32>,
    %8 = vector.extract_strided_slice %6 {offsets = [0, 127], sizes = [8, 128], strides = [1, 1]} : vector<8x256xf32> to vector<8x128xf32>
    %9 = vector.extract_strided_slice %6 {offsets = [0, 128], sizes = [8, 128], strides = [1, 1]} : vector<8x256xf32> to vector<8x128xf32>
    %10 = tpu.concatenate %8, %9 in 0 : vector<8x128xf32>, vector<8x128xf32> -> vector<16x128xf32>
    %c0_7 = arith.constant 0 : index
    %c0_8 = arith.constant 0 : index
    %11 = vector.load %arg3[%c0_7, %c0_8] : memref<8x16xf32, #tpu.memory_space<vmem>>, vector<8x16xf32>
    %cst = arith.constant dense<0.000000e+00> : vector<8x128xf32>
    %12 = tpu.matmul %11, %10, %cst {dimension_numbers = #tpu.dot_dimension_numbers<[1], [0], [0], [1], [0, 0, 1, 1], [], []>} : vector<8x16xf32>, vector<16x128xf32>, vector<8x128xf32> -> vector<8x128xf32>
    %c0_9 = arith.constant 0 : index
    %c0_10 = arith.constant 0 : index
    %13 = vector.load %arg4[%c0_9, %c0_10] : memref<8x1xf32, #tpu.memory_space<vmem>>, vector<8x1xf32>
    %14 = vector.broadcast %13 : vector<8x1xf32> to vector<8x128xf32>
    %15 = arith.addf %12, %14 : vector<8x128xf32>
    %cst_11 = arith.constant 0.000000e+00 : f32
    %16 = vector.broadcast %cst_11 : f32 to vector<8x128xf32>
    %17 = arith.maximumf %15, %16 : vector<8x128xf32>
    %c0_12 = arith.constant 0 : index
    %c0_13 = arith.constant 0 : index
    %18 = vector.load %arg11[%c0_12, %c0_13] : memref<8x128xf32, #tpu.memory_space<vmem>>, vector<8x128xf32>
    %19 = tpu.concatenate %18, %17 in 1 : vector<8x128xf32>, vector<8x128xf32> -> vector<8x256xf32>
    %c0_14 = arith.constant 0 : index
    %c0_15 = arith.constant 0 : index
    %20 = vector.load %arg11[%c0_14, %c0_15] : memref<8x128xf32, #tpu.memory_space<vmem>>, vector<8x128xf32>
    tpu.vector_store %arg11[%c0_14, %c0_15], %17 {strides = array<i32>} : memref<8x128xf32, #tpu.memory_space<vmem>>, vector<8x128xf32>,
    %21 = vector.extract_strided_slice %19 {offsets = [0, 127], sizes = [8, 128], strides = [1, 1]} : vector<8x256xf32> to vector<8x128xf32>
    %22 = vector.extract_strided_slice %19 {offsets = [0, 128], sizes = [8, 128], strides = [1, 1]} : vector<8x256xf32> to vector<8x128xf32>
    %23 = tpu.concatenate %21, %22 in 0 : vector<8x128xf32>, vector<8x128xf32> -> vector<16x128xf32>
    %c0_16 = arith.constant 0 : index
    %c0_17 = arith.constant 0 : index
    %24 = vector.load %arg5[%c0_16, %c0_17] : memref<8x16xf32, #tpu.memory_space<vmem>>, vector<8x16xf32>
    %cst_18 = arith.constant dense<0.000000e+00> : vector<8x128xf32>
    %25 = tpu.matmul %24, %23, %cst_18 {dimension_numbers = #tpu.dot_dimension_numbers<[1], [0], [0], [1], [0, 0, 1, 1], [], []>} : vector<8x16xf32>, vector<16x128xf32>, vector<8x128xf32> -> vector<8x128xf32>
    %c0_19 = arith.constant 0 : index
    %c0_20 = arith.constant 0 : index
    %26 = vector.load %arg6[%c0_19, %c0_20] : memref<8x1xf32, #tpu.memory_space<vmem>>, vector<8x1xf32>
    %27 = vector.broadcast %26 : vector<8x1xf32> to vector<8x128xf32>
    %28 = arith.addf %25, %27 : vector<8x128xf32>
    %cst_21 = arith.constant 0.000000e+00 : f32
    %29 = vector.broadcast %cst_21 : f32 to vector<8x128xf32>
    %30 = arith.maximumf %28, %29 : vector<8x128xf32>
    %c0_22 = arith.constant 0 : index
    %c0_23 = arith.constant 0 : index
    %31 = vector.load %arg7[%c0_22, %c0_23] : memref<8x8xf32, #tpu.memory_space<vmem>>, vector<8x8xf32>
    %cst_24 = arith.constant dense<0.000000e+00> : vector<8x128xf32>
    %32 = tpu.matmul %31, %4, %cst_24 {dimension_numbers = #tpu.dot_dimension_numbers<[1], [0], [0], [1], [0, 0, 1, 1], [], []>} : vector<8x8xf32>, vector<8x128xf32>, vector<8x128xf32> -> vector<8x128xf32>
    %c0_25 = arith.constant 0 : index
    %c0_26 = arith.constant 0 : index
    %33 = vector.load %arg8[%c0_25, %c0_26] : memref<8x1xf32, #tpu.memory_space<vmem>>, vector<8x1xf32>
    %34 = vector.broadcast %33 : vector<8x1xf32> to vector<8x128xf32>
    %35 = arith.addf %32, %34 : vector<8x128xf32>
    %36 = arith.addf %30, %35 : vector<8x128xf32>
    %cst_27 = arith.constant 0.000000e+00 : f32
    %37 = vector.broadcast %cst_27 : f32 to vector<8x128xf32>
    %38 = arith.maximumf %36, %37 : vector<8x128xf32>
    %c0_28 = arith.constant 0 : index
    %c0_29 = arith.constant 0 : index
    %c0_30 = arith.constant 0 : index
    %39 = vector.load %arg9[%c0_28, %c0_29, %c0_30] : memref<1x8x128xf32, #tpu.memory_space<vmem>>, vector<1x8x128xf32>
    %40 = vector.shape_cast %39 : vector<1x8x128xf32> to vector<8x128xf32>
    %41 = vector.shape_cast %38 : vector<8x128xf32> to vector<1x8x128xf32>
    tpu.vector_store %arg9[%c0_28, %c0_29, %c0_30], %41 {strides = array<i32>} : memref<1x8x128xf32, #tpu.memory_space<vmem>>, vector<1x8x128xf32>,
    return
  }
  func.func @transform_0(%arg0: i32, %arg1: i32) -> (i32, i32, i32) {
    %c0_i32 = arith.constant 0 : i32
    %c0_i32_0 = arith.constant 0 : i32
    return %arg0, %c0_i32, %arg1 : i32, i32, i32
  }
  func.func @transform_1(%arg0: i32, %arg1: i32) -> (i32, i32) {
    %c0_i32 = arith.constant 0 : i32
    %c0_i32_0 = arith.constant 0 : i32
    %c0_i32_1 = arith.constant 0 : i32
    return %c0_i32, %c0_i32_0 : i32, i32
  }
  func.func @transform_2(%arg0: i32, %arg1: i32) -> (i32, i32) {
    %c0_i32 = arith.constant 0 : i32
    %c0_i32_0 = arith.constant 0 : i32
    %c0_i32_1 = arith.constant 0 : i32
    return %c0_i32, %c0_i32_0 : i32, i32
  }
  func.func @transform_3(%arg0: i32, %arg1: i32) -> (i32, i32) {
    %c0_i32 = arith.constant 0 : i32
    %c0_i32_0 = arith.constant 0 : i32
    %c0_i32_1 = arith.constant 0 : i32
    return %c0_i32, %c0_i32_0 : i32, i32
  }
  func.func @transform_4(%arg0: i32, %arg1: i32) -> (i32, i32) {
    %c0_i32 = arith.constant 0 : i32
    %c0_i32_0 = arith.constant 0 : i32
    %c0_i32_1 = arith.constant 0 : i32
    return %c0_i32, %c0_i32_0 : i32, i32
  }
  func.func @transform_5(%arg0: i32, %arg1: i32) -> (i32, i32) {
    %c0_i32 = arith.constant 0 : i32
    %c0_i32_0 = arith.constant 0 : i32
    %c0_i32_1 = arith.constant 0 : i32
    return %c0_i32, %c0_i32_0 : i32, i32
  }
  func.func @transform_6(%arg0: i32, %arg1: i32) -> (i32, i32) {
    %c0_i32 = arith.constant 0 : i32
    %c0_i32_0 = arith.constant 0 : i32
    %c0_i32_1 = arith.constant 0 : i32
    return %c0_i32, %c0_i32_0 : i32, i32
  }
  func.func @transform_7(%arg0: i32, %arg1: i32) -> (i32, i32, i32) {
    %c0_i32 = arith.constant 0 : i32
    %c0_i32_0 = arith.constant 0 : i32
    return %arg0, %c0_i32, %arg1 : i32, i32, i32
  }
}

module attributes {stable_mosaic.version = 11 : i64} {
  func.func @kernel(%arg0: i32, %arg1: i32, %arg2: memref<1x8x128xf32, #tpu.memory_space<vmem>>, %arg3: memref<8x16xf32, #tpu.memory_space<vmem>>, %arg4: memref<8x1xf32, #tpu.memory_space<vmem>>, %arg5: memref<8x16xf32, #tpu.memory_space<vmem>>, %arg6: memref<8x1xf32, #tpu.memory_space<vmem>>, %arg7: memref<1x8x128xf32, #tpu.memory_space<vmem>>, %arg8: memref<8x128xf32, #tpu.memory_space<vmem>>, %arg9: memref<8x128xf32, #tpu.memory_space<vmem>>) attributes {dimension_semantics = [#tpu.dimension_semantics<parallel>, #tpu.dimension_semantics<arbitrary>], iteration_bounds = array<i64: 2, 1>, scalar_prefetch = 0 : i64, scratch_operands = 2 : i64, tpu.core_type = #tpu.core_type<tc>, window_params = [{transform_indices = @transform_0, window_bounds = array<i64: 1, 8, 128>}, {pipeline_mode = #tpu.pipeline_mode<synchronous>, transform_indices = @transform_1, window_bounds = array<i64: 8, 16>}, {pipeline_mode = #tpu.pipeline_mode<synchronous>, transform_indices = @transform_2, window_bounds = array<i64: 8, 1>}, {pipeline_mode = #tpu.pipeline_mode<synchronous>, transform_indices = @transform_3, window_bounds = array<i64: 8, 16>}, {pipeline_mode = #tpu.pipeline_mode<synchronous>, transform_indices = @transform_4, window_bounds = array<i64: 8, 1>}, {transform_indices = @transform_5, window_bounds = array<i64: 1, 8, 128>}]} {
    %c0_i32 = arith.constant 0 : i32
    %0 = arith.cmpi eq, %arg1, %c0_i32 : i32
    %1 = arith.extui %0 : i1 to i32
    %c0_i32_0 = arith.constant 0 : i32
    %2 = arith.cmpi ne, %1, %c0_i32_0 : i32
    scf.if %2 {
      %cst_26 = arith.constant 0.000000e+00 : f32
      %37 = vector.broadcast %cst_26 : f32 to vector<8x128xf32>
      %c0_27 = arith.constant 0 : index
      %c0_28 = arith.constant 0 : index
      %38 = vector.load %arg8[%c0_27, %c0_28] : memref<8x128xf32, #tpu.memory_space<vmem>>, vector<8x128xf32>
      tpu.vector_store %arg8[%c0_27, %c0_28], %37 {strides = array<i32>} : memref<8x128xf32, #tpu.memory_space<vmem>>, vector<8x128xf32>,
      %cst_29 = arith.constant 0.000000e+00 : f32
      %39 = vector.broadcast %cst_29 : f32 to vector<8x128xf32>
      %c0_30 = arith.constant 0 : index
      %c0_31 = arith.constant 0 : index
      %40 = vector.load %arg9[%c0_30, %c0_31] : memref<8x128xf32, #tpu.memory_space<vmem>>, vector<8x128xf32>
      tpu.vector_store %arg9[%c0_30, %c0_31], %39 {strides = array<i32>} : memref<8x128xf32, #tpu.memory_space<vmem>>, vector<8x128xf32>,
    } else {
    }
    %c0 = arith.constant 0 : index
    %c0_1 = arith.constant 0 : index
    %c0_2 = arith.constant 0 : index
    %3 = vector.load %arg2[%c0, %c0_1, %c0_2] : memref<1x8x128xf32, #tpu.memory_space<vmem>>, vector<1x8x128xf32>
    %4 = vector.shape_cast %3 : vector<1x8x128xf32> to vector<8x128xf32>
    %c0_3 = arith.constant 0 : index
    %c0_4 = arith.constant 0 : index
    %5 = vector.load %arg8[%c0_3, %c0_4] : memref<8x128xf32, #tpu.memory_space<vmem>>, vector<8x128xf32>
    %6 = tpu.concatenate %5, %4 in 1 : vector<8x128xf32>, vector<8x128xf32> -> vector<8x256xf32>
    %c0_5 = arith.constant 0 : index
    %c0_6 = arith.constant 0 : index
    %7 = vector.load %arg8[%c0_5, %c0_6] : memref<8x128xf32, #tpu.memory_space<vmem>>, vector<8x128xf32>
    tpu.vector_store %arg8[%c0_5, %c0_6], %4 {strides = array<i32>} : memref<8x128xf32, #tpu.memory_space<vmem>>, vector<8x128xf32>,
    %8 = vector.extract_strided_slice %6 {offsets = [0, 126], sizes = [8, 128], strides = [1, 1]} : vector<8x256xf32> to vector<8x128xf32>
    %9 = vector.extract_strided_slice %6 {offsets = [0, 128], sizes = [8, 128], strides = [1, 1]} : vector<8x256xf32> to vector<8x128xf32>
    %10 = tpu.concatenate %8, %9 in 0 : vector<8x128xf32>, vector<8x128xf32> -> vector<16x128xf32>
    %c0_7 = arith.constant 0 : index
    %c0_8 = arith.constant 0 : index
    %11 = vector.load %arg3[%c0_7, %c0_8] : memref<8x16xf32, #tpu.memory_space<vmem>>, vector<8x16xf32>
    %cst = arith.constant dense<0.000000e+00> : vector<8x128xf32>
    %12 = tpu.matmul %11, %10, %cst {dimension_numbers = #tpu.dot_dimension_numbers<[1], [0], [0], [1], [0, 0, 1, 1], [], []>} : vector<8x16xf32>, vector<16x128xf32>, vector<8x128xf32> -> vector<8x128xf32>
    %c0_9 = arith.constant 0 : index
    %c0_10 = arith.constant 0 : index
    %13 = vector.load %arg4[%c0_9, %c0_10] : memref<8x1xf32, #tpu.memory_space<vmem>>, vector<8x1xf32>
    %14 = vector.broadcast %13 : vector<8x1xf32> to vector<8x128xf32>
    %15 = arith.addf %12, %14 : vector<8x128xf32>
    %cst_11 = arith.constant 0.000000e+00 : f32
    %16 = vector.broadcast %cst_11 : f32 to vector<8x128xf32>
    %17 = arith.maximumf %15, %16 : vector<8x128xf32>
    %c0_12 = arith.constant 0 : index
    %c0_13 = arith.constant 0 : index
    %18 = vector.load %arg9[%c0_12, %c0_13] : memref<8x128xf32, #tpu.memory_space<vmem>>, vector<8x128xf32>
    %19 = tpu.concatenate %18, %17 in 1 : vector<8x128xf32>, vector<8x128xf32> -> vector<8x256xf32>
    %c0_14 = arith.constant 0 : index
    %c0_15 = arith.constant 0 : index
    %20 = vector.load %arg9[%c0_14, %c0_15] : memref<8x128xf32, #tpu.memory_space<vmem>>, vector<8x128xf32>
    tpu.vector_store %arg9[%c0_14, %c0_15], %17 {strides = array<i32>} : memref<8x128xf32, #tpu.memory_space<vmem>>, vector<8x128xf32>,
    %21 = vector.extract_strided_slice %19 {offsets = [0, 126], sizes = [8, 128], strides = [1, 1]} : vector<8x256xf32> to vector<8x128xf32>
    %22 = vector.extract_strided_slice %19 {offsets = [0, 128], sizes = [8, 128], strides = [1, 1]} : vector<8x256xf32> to vector<8x128xf32>
    %23 = tpu.concatenate %21, %22 in 0 : vector<8x128xf32>, vector<8x128xf32> -> vector<16x128xf32>
    %c0_16 = arith.constant 0 : index
    %c0_17 = arith.constant 0 : index
    %24 = vector.load %arg5[%c0_16, %c0_17] : memref<8x16xf32, #tpu.memory_space<vmem>>, vector<8x16xf32>
    %cst_18 = arith.constant dense<0.000000e+00> : vector<8x128xf32>
    %25 = tpu.matmul %24, %23, %cst_18 {dimension_numbers = #tpu.dot_dimension_numbers<[1], [0], [0], [1], [0, 0, 1, 1], [], []>} : vector<8x16xf32>, vector<16x128xf32>, vector<8x128xf32> -> vector<8x128xf32>
    %c0_19 = arith.constant 0 : index
    %c0_20 = arith.constant 0 : index
    %26 = vector.load %arg6[%c0_19, %c0_20] : memref<8x1xf32, #tpu.memory_space<vmem>>, vector<8x1xf32>
    %27 = vector.broadcast %26 : vector<8x1xf32> to vector<8x128xf32>
    %28 = arith.addf %25, %27 : vector<8x128xf32>
    %cst_21 = arith.constant 0.000000e+00 : f32
    %29 = vector.broadcast %cst_21 : f32 to vector<8x128xf32>
    %30 = arith.maximumf %28, %29 : vector<8x128xf32>
    %31 = arith.addf %30, %4 : vector<8x128xf32>
    %cst_22 = arith.constant 0.000000e+00 : f32
    %32 = vector.broadcast %cst_22 : f32 to vector<8x128xf32>
    %33 = arith.maximumf %31, %32 : vector<8x128xf32>
    %c0_23 = arith.constant 0 : index
    %c0_24 = arith.constant 0 : index
    %c0_25 = arith.constant 0 : index
    %34 = vector.load %arg7[%c0_23, %c0_24, %c0_25] : memref<1x8x128xf32, #tpu.memory_space<vmem>>, vector<1x8x128xf32>
    %35 = vector.shape_cast %34 : vector<1x8x128xf32> to vector<8x128xf32>
    %36 = vector.shape_cast %33 : vector<8x128xf32> to vector<1x8x128xf32>
    tpu.vector_store %arg7[%c0_23, %c0_24, %c0_25], %36 {strides = array<i32>} : memref<1x8x128xf32, #tpu.memory_space<vmem>>, vector<1x8x128xf32>,
    return
  }
  func.func @transform_0(%arg0: i32, %arg1: i32) -> (i32, i32, i32) {
    %c0_i32 = arith.constant 0 : i32
    %c0_i32_0 = arith.constant 0 : i32
    return %arg0, %c0_i32, %arg1 : i32, i32, i32
  }
  func.func @transform_1(%arg0: i32, %arg1: i32) -> (i32, i32) {
    %c0_i32 = arith.constant 0 : i32
    %c0_i32_0 = arith.constant 0 : i32
    %c0_i32_1 = arith.constant 0 : i32
    return %c0_i32, %c0_i32_0 : i32, i32
  }
  func.func @transform_2(%arg0: i32, %arg1: i32) -> (i32, i32) {
    %c0_i32 = arith.constant 0 : i32
    %c0_i32_0 = arith.constant 0 : i32
    %c0_i32_1 = arith.constant 0 : i32
    return %c0_i32, %c0_i32_0 : i32, i32
  }
  func.func @transform_3(%arg0: i32, %arg1: i32) -> (i32, i32) {
    %c0_i32 = arith.constant 0 : i32
    %c0_i32_0 = arith.constant 0 : i32
    %c0_i32_1 = arith.constant 0 : i32
    return %c0_i32, %c0_i32_0 : i32, i32
  }
  func.func @transform_4(%arg0: i32, %arg1: i32) -> (i32, i32) {
    %c0_i32 = arith.constant 0 : i32
    %c0_i32_0 = arith.constant 0 : i32
    %c0_i32_1 = arith.constant 0 : i32
    return %c0_i32, %c0_i32_0 : i32, i32
  }
  func.func @transform_5(%arg0: i32, %arg1: i32) -> (i32, i32, i32) {
    %c0_i32 = arith.constant 0 : i32
    %c0_i32_0 = arith.constant 0 : i32
    return %arg0, %c0_i32, %arg1 : i32, i32, i32
  }
}

</mosaic_0001>

<llo_original>
// kernel: _lambda_.3
$region0: #{_lambda_.3}
  #allocation0 [shape = 'u32[]', space=smem, size = 0x4, offset = 0x4, fixed_abs, tag = 'smem constant byte address 0x4 - core index']
  #allocation1 [shape = 'u32[144,128]{1,0:T(1,128)}', space=vmem, size = 0x12000, scoped, tag = 'internal scratch']
  #allocation2 [shape = 'f32[8,128]{1,0:T(8,128)}', space=vmem, size = 0x1000, scoped, tag = 'scratch operand']
  #allocation3 [shape = 'f32[8,128]{1,0:T(8,128)}', space=vmem, size = 0x1000, scoped, tag = 'scratch operand']
  %s0 = inlined_call_operand.vmem [shape: f32[2,8,128], index: 0, kind: input, shape index: {}]
  %s1 = inlined_call_operand.vmem [shape: f32[8,16], index: 1, kind: input, shape index: {}]
  %s2 = inlined_call_operand.vmem [shape: f32[8,1], index: 2, kind: input, shape index: {}]
  %s3 = inlined_call_operand.vmem [shape: f32[8,16], index: 3, kind: input, shape index: {}]
  %s4 = inlined_call_operand.vmem [shape: f32[8,1], index: 4, kind: input, shape index: {}]
  %s5 = inlined_call_operand.vmem [shape: f32[8,8], index: 5, kind: input, shape index: {}]
  %s6 = inlined_call_operand.vmem [shape: f32[8,1], index: 6, kind: input, shape index: {}]
  %s7 = inlined_call_operand.vmem [shape: f32[2,8,128], index: 7, kind: output, shape index: {}]
  %s8 = sld [smem:[#allocation0]]
  $region65: #{_lambda_.3} parent=0
    _
  %s10 = ssub.s32 1, %s8
  %s11 = scalar_select 0, %s10, %s8
  loop: start=0, step=1, limit=4
  $region2: #{_lambda_.3} parent=0 // loop_pre_header
    _
  $region3: #{_lambda_.3} parent=0 // loop_header
    %s13 = sphi 0, %s17
    %p14 = scmp.ge.s32.totalorder %s13, 4
    %s20 = sphi 0, %s32
    %s21 = sphi 0, %s28
    %s22 = sphi 0, %s20
    %s23 = sphi 0, %s21
    %s24 = sphi 0, %s22
    %s25 = sphi 0, %s23
    %s37 = sphi 0, %s39
    %s40 = sphi 0, %s37
    %s41 = sphi 0, %s40
    %s57 = sphi 0, %s41
    %s61 = sphi 0, %s61
    %s63 = sphi 0, %s61
    %s64 = sphi 0, %s63
    %s78 = sphi 0, %s64
    %s82 = sphi 0, %s82
    %s84 = sphi 0, %s82
    %s85 = sphi 0, %s84
    %s99 = sphi 0, %s85
    %s103 = sphi 0, %s103
    %s105 = sphi 0, %s103
    %s106 = sphi 0, %s105
    %s120 = sphi 0, %s106
    %s124 = sphi 0, %s124
    %s126 = sphi 0, %s124
    %s127 = sphi 0, %s126
    %s141 = sphi 0, %s127
    %s145 = sphi 0, %s145
    %s147 = sphi 0, %s145
    %s148 = sphi 0, %s147
    %s162 = sphi 0, %s148
    %s166 = sphi 0, %s166
    %s168 = sphi 0, %s166
    %s169 = sphi 0, %s168
    %s183 = sphi 0, %s169
    %s191 = sphi 0, %s193
    %s194 = sphi 0, %s191
    %s195 = sphi 0, %s194
    %s211 = sphi 0, %s195
  $region4: #{_lambda_.3} parent=0 // loop_header_branch
    %16 = sbr.rel (%p14) target = $region8
  $region5: #{_lambda_.3} parent=0 // loop_body
    %s18 = ssub.s32 %s13, 1
    %s19 = ssub.s32 %s13, 2
    %s26 = sadd.s32 1, %s21
    %p27 = scmp.ge.s32.totalorder %s26, 1
    %s28 = scalar_select %p27, 0, %s26
    %s29 = sadd.s32 1, %s20
    %s30 = scalar_select %p27, %s29, %s20
    %p31 = scmp.ge.s32.totalorder %s30, 2
    %s32 = scalar_select %p31, 0, %s30
    %s33 = ssub.s32 %s20, %s32
    %s34 = ssub.s32 %s21, %s28
    %s35 = sor.u32 %s33, %s34
    %p36 = scmp.eq.s32.totalorder %s35, 0
    %s38 = sadd.s32 %s37, 1
    %s39 = scalar_select %p36, %s37, %s38
    %p42 = pneg %p36
    %p43 = scmp.eq.s32.totalorder %s13, 1
    %p44 = por %p42, %p43
    %p45 = scmp.ne.s32.totalorder %s37, %s40
    %p46 = scmp.eq.s32.totalorder %s13, 0
    %p47 = por %p45, %p46
    %p48 = scmp.ne.s32.totalorder %s37, %s40
    %p49 = scmp.eq.s32.totalorder %s18, 1
    %p50 = por %p48, %p49
    %p51 = scmp.ne.s32.totalorder %s40, %s41
    %p52 = scmp.eq.s32.totalorder %s18, 0
    %p53 = por %p51, %p52
    %p54 = scmp.ne.s32.totalorder %s40, %s41
    %p55 = scmp.eq.s32.totalorder %s19, 1
    %p56 = por %p54, %p55
    %p58 = scmp.ne.s32.totalorder %s41, %s57
    %p59 = scmp.eq.s32.totalorder %s19, 0
    %p60 = por %p58, %p59
    %s62 = sadd.s32 %s61, 1
    %p65 = scmp.eq.s32.totalorder %s13, 1
    %p66 = scmp.ne.s32.totalorder %s61, %s63
    %p67 = scmp.eq.s32.totalorder %s13, 0
    %p68 = por %p66, %p67
    %p69 = scmp.ne.s32.totalorder %s61, %s63
    %p70 = scmp.eq.s32.totalorder %s18, 1
    %p71 = por %p69, %p70
    %p72 = scmp.ne.s32.totalorder %s63, %s64
    %p73 = scmp.eq.s32.totalorder %s18, 0
    %p74 = por %p72, %p73
    %p75 = scmp.ne.s32.totalorder %s63, %s64
    %p76 = scmp.eq.s32.totalorder %s19, 1
    %p77 = por %p75, %p76
    %p79 = scmp.ne.s32.totalorder %s64, %s78
    %p80 = scmp.eq.s32.totalorder %s19, 0
    %p81 = por %p79, %p80
    %s83 = sadd.s32 %s82, 1
    %p86 = scmp.eq.s32.totalorder %s13, 1
    %p87 = scmp.ne.s32.totalorder %s82, %s84
    %p88 = scmp.eq.s32.totalorder %s13, 0
    %p89 = por %p87, %p88
    %p90 = scmp.ne.s32.totalorder %s82, %s84
    %p91 = scmp.eq.s32.totalorder %s18, 1
    %p92 = por %p90, %p91
    %p93 = scmp.ne.s32.totalorder %s84, %s85
    %p94 = scmp.eq.s32.totalorder %s18, 0
    %p95 = por %p93, %p94
    %p96 = scmp.ne.s32.totalorder %s84, %s85
    %p97 = scmp.eq.s32.totalorder %s19, 1
    %p98 = por %p96, %p97
    %p100 = scmp.ne.s32.totalorder %s85, %s99
    %p101 = scmp.eq.s32.totalorder %s19, 0
    %p102 = por %p100, %p101
    %s104 = sadd.s32 %s103, 1
    %p107 = scmp.eq.s32.totalorder %s13, 1
    %p108 = scmp.ne.s32.totalorder %s103, %s105
    %p109 = scmp.eq.s32.totalorder %s13, 0
    %p110 = por %p108, %p109
    %p111 = scmp.ne.s32.totalorder %s103, %s105
    %p112 = scmp.eq.s32.totalorder %s18, 1
    %p113 = por %p111, %p112
    %p114 = scmp.ne.s32.totalorder %s105, %s106
    %p115 = scmp.eq.s32.totalorder %s18, 0
    %p116 = por %p114, %p115
    %p117 = scmp.ne.s32.totalorder %s105, %s106
    %p118 = scmp.eq.s32.totalorder %s19, 1
    %p119 = por %p117, %p118
    %p121 = scmp.ne.s32.totalorder %s106, %s120
    %p122 = scmp.eq.s32.totalorder %s19, 0
    %p123 = por %p121, %p122
    %s125 = sadd.s32 %s124, 1
    %p128 = scmp.eq.s32.totalorder %s13, 1
    %p129 = scmp.ne.s32.totalorder %s124, %s126
    %p130 = scmp.eq.s32.totalorder %s13, 0
    %p131 = por %p129, %p130
    %p132 = scmp.ne.s32.totalorder %s124, %s126
    %p133 = scmp.eq.s32.totalorder %s18, 1
    %p134 = por %p132, %p133
    %p135 = scmp.ne.s32.totalorder %s126, %s127
    %p136 = scmp.eq.s32.totalorder %s18, 0
    %p137 = por %p135, %p136
    %p138 = scmp.ne.s32.totalorder %s126, %s127
    %p139 = scmp.eq.s32.totalorder %s19, 1
    %p140 = por %p138, %p139
    %p142 = scmp.ne.s32.totalorder %s127, %s141
    %p143 = scmp.eq.s32.totalorder %s19, 0
    %p144 = por %p142, %p143
    %s146 = sadd.s32 %s145, 1
    %p149 = scmp.eq.s32.totalorder %s13, 1
    %p150 = scmp.ne.s32.totalorder %s145, %s147
    %p151 = scmp.eq.s32.totalorder %s13, 0
    %p152 = por %p150, %p151
    %p153 = scmp.ne.s32.totalorder %s145, %s147
    %p154 = scmp.eq.s32.totalorder %s18, 1
    %p155 = por %p153, %p154
    %p156 = scmp.ne.s32.totalorder %s147, %s148
    %p157 = scmp.eq.s32.totalorder %s18, 0
    %p158 = por %p156, %p157
    %p159 = scmp.ne.s32.totalorder %s147, %s148
    %p160 = scmp.eq.s32.totalorder %s19, 1
    %p161 = por %p159, %p160
    %p163 = scmp.ne.s32.totalorder %s148, %s162
    %p164 = scmp.eq.s32.totalorder %s19, 0
    %p165 = por %p163, %p164
    %s167 = sadd.s32 %s166, 1
    %p170 = scmp.eq.s32.totalorder %s13, 1
    %p171 = scmp.ne.s32.totalorder %s166, %s168
    %p172 = scmp.eq.s32.totalorder %s13, 0
    %p173 = por %p171, %p172
    %p174 = scmp.ne.s32.totalorder %s166, %s168
    %p175 = scmp.eq.s32.totalorder %s18, 1
    %p176 = por %p174, %p175
    %p177 = scmp.ne.s32.totalorder %s168, %s169
    %p178 = scmp.eq.s32.totalorder %s18, 0
    %p179 = por %p177, %p178
    %p180 = scmp.ne.s32.totalorder %s168, %s169
    %p181 = scmp.eq.s32.totalorder %s19, 1
    %p182 = por %p180, %p181
    %p184 = scmp.ne.s32.totalorder %s169, %s183
    %p185 = scmp.eq.s32.totalorder %s19, 0
    %p186 = por %p184, %p185
    %s187 = ssub.s32 %s20, %s32
    %s188 = ssub.s32 %s21, %s28
    %s189 = sor.u32 %s187, %s188
    %p190 = scmp.eq.s32.totalorder %s189, 0
    %s192 = sadd.s32 %s191, 1
    %s193 = scalar_select %p190, %s191, %s192
    %p196 = pneg %p190
    %p197 = scmp.eq.s32.totalorder %s13, 1
    %p198 = por %p196, %p197
    %p199 = scmp.ne.s32.totalorder %s191, %s194
    %p200 = scmp.eq.s32.totalorder %s13, 0
    %p201 = por %p199, %p200
    %p202 = scmp.ne.s32.totalorder %s191, %s194
    %p203 = scmp.eq.s32.totalorder %s18, 1
    %p204 = por %p202, %p203
    %p205 = scmp.ne.s32.totalorder %s194, %s195
    %p206 = scmp.eq.s32.totalorder %s18, 0
    %p207 = por %p205, %p206
    %p208 = scmp.ne.s32.totalorder %s194, %s195
    %p209 = scmp.eq.s32.totalorder %s19, 1
    %p210 = por %p208, %p209
    %p212 = scmp.ne.s32.totalorder %s195, %s211
    %p213 = scmp.eq.s32.totalorder %s19, 0
    %p214 = por %p212, %p213
    %p215 = scmp.le.s32.totalorder 1, %s13
    %p216 = scmp.lt.s32.totalorder %s13, 3
    %p217 = pnand %p215, %p216
    %p218 = pneg %p217
    // Predicated region
    $region9: #{_lambda_.3} parent=5 // pred_check
      _
    $region10: #{_lambda_.3} parent=5 // pred_check_branch
      %220 = sbr.rel (%p217) target = $region12
    $region11: #{_lambda_.3} parent=5 // pred_region
      %s221 = ssub.s32 %s13, 1
      // Predicated region
      $region13: #{_lambda_.3} parent=11 // pred_check
        %p222 = pneg %p74
      $region14: #{_lambda_.3} parent=11 // pred_check_branch
        %224 = sbr.rel (%p222) target = $region16
      $region15: #{_lambda_.3} parent=11 // pred_region
        _
      $region16: #{_lambda_.3} parent=11 // pred_fallthru
        _
      // Predicated region
      $region17: #{_lambda_.3} parent=11 // pred_check
        %p225 = pneg %p95
      $region18: #{_lambda_.3} parent=11 // pred_check_branch
        %227 = sbr.rel (%p225) target = $region20
      $region19: #{_lambda_.3} parent=11 // pred_region
        _
      $region20: #{_lambda_.3} parent=11 // pred_fallthru
        _
      // Predicated region
      $region21: #{_lambda_.3} parent=11 // pred_check
        %p228 = pneg %p116
      $region22: #{_lambda_.3} parent=11 // pred_check_branch
        %230 = sbr.rel (%p228) target = $region24
      $region23: #{_lambda_.3} parent=11 // pred_region
        _
      $region24: #{_lambda_.3} parent=11 // pred_fallthru
        _
      // Predicated region
      $region25: #{_lambda_.3} parent=11 // pred_check
        %p231 = pneg %p137
      $region26: #{_lambda_.3} parent=11 // pred_check_branch
        %233 = sbr.rel (%p231) target = $region28
      $region27: #{_lambda_.3} parent=11 // pred_region
        _
      $region28: #{_lambda_.3} parent=11 // pred_fallthru
        _
      // Predicated region
      $region29: #{_lambda_.3} parent=11 // pred_check
        %p234 = pneg %p158
      $region30: #{_lambda_.3} parent=11 // pred_check_branch
        %236 = sbr.rel (%p234) target = $region32
      $region31: #{_lambda_.3} parent=11 // pred_region
        _
      $region32: #{_lambda_.3} parent=11 // pred_fallthru
        _
      // Predicated region
      $region33: #{_lambda_.3} parent=11 // pred_check
        %p237 = pneg %p179
      $region34: #{_lambda_.3} parent=11 // pred_check_branch
        %239 = sbr.rel (%p237) target = $region36
      $region35: #{_lambda_.3} parent=11 // pred_region
        _
      $region36: #{_lambda_.3} parent=11 // pred_fallthru
        _
    $region12: #{_lambda_.3} parent=5 // pred_fallthru
      _
    %p240 = scmp.lt.s32.totalorder %s13, 2
    // Predicated region
    $region37: #{_lambda_.3} parent=5 // pred_check
      %p241 = pneg %p240
    $region38: #{_lambda_.3} parent=5 // pred_check_branch
      %243 = sbr.rel (%p241) target = $region40
    $region39: #{_lambda_.3} parent=5 // pred_region
      // Predicated region
      $region41: #{_lambda_.3} parent=39 // pred_check
        %p244 = pneg %p47
      $region42: #{_lambda_.3} parent=39 // pred_check_branch
        %246 = sbr.rel (%p244) target = $region44
      $region43: #{_lambda_.3} parent=39 // pred_region
        %p247 = scmp.lt.s32.totalorder %s20, 1
        %s248 = scalar_select %p247, %s20, 1
        %p249 = scmp.lt.s32.totalorder %s21, 0
        %s250 = scalar_select %p249, %s21, 0
        %s251 = sadd.s32 %s250, %s248
        %s252 = smul.addr %s251, 8
        %s253 = scalar_lea.vmem %s0, %s252
      $region44: #{_lambda_.3} parent=39 // pred_fallthru
        _
    $region40: #{_lambda_.3} parent=5 // pred_fallthru
      _
    %p254 = scmp.le.s32.totalorder 1, %s13
    %p255 = scmp.lt.s32.totalorder %s13, 3
    %p256 = pnand %p254, %p255
    %p257 = pneg %p256
    // Predicated region
    $region45: #{_lambda_.3} parent=5 // pred_check
      _
    $region46: #{_lambda_.3} parent=5 // pred_check_branch
      %259 = sbr.rel (%p256) target = $region48
    $region47: #{_lambda_.3} parent=5 // pred_region
      %s260 = ssub.s32 %s13, 1
      %p261 = scmp.lt.s32.totalorder %s22, 1
      %s262 = scalar_select %p261, %s22, 1
      %p263 = scmp.lt.s32.totalorder %s23, 0
      %s264 = scalar_select %p263, %s23, 0
      %s265 = sadd.s32 %s264, %s262
      %s266 = smul.addr %s265, 8
      %s267 = scalar_lea.vmem %s0, %s266
      %p268 = pneg %p53
      %p269 = pneg %p50
      %p270 = pneg %p74
      %p271 = pneg %p71
      %p272 = pneg %p95
      %p273 = pneg %p92
      %p274 = pneg %p116
      %p275 = pneg %p113
      %p276 = pneg %p137
      %p277 = pneg %p134
      %p278 = pneg %p158
      %p279 = pneg %p155
      %p280 = pneg %p179
      %p281 = pneg %p176
      %p282 = pneg %p207
      %p283 = pneg %p204
      %p284 = scmp.lt.s32.totalorder %s22, 1
      %s285 = scalar_select %p284, %s22, 1
      %p286 = scmp.lt.s32.totalorder %s23, 0
      %s287 = scalar_select %p286, %s23, 0
      %s288 = sadd.s32 %s287, %s285
      %s289 = smul.addr %s288, 8
      %s290 = scalar_lea.vmem %s7, %s289
      %p291 = scmp.lt.s32.totalorder %s22, 1
      %s292 = scalar_select %p291, %s22, 1
      %p293 = scmp.lt.s32.totalorder %s23, 0
      %s294 = scalar_select %p293, %s23, 0
      %s295 = sadd.s32 %s294, %s292
      %s296 = smul.addr %s295, 8
      %s297 = scalar_lea.vmem %s0, %s296
      %p298 = scmp.lt.s32.totalorder %s22, 1
      %s299 = scalar_select %p298, %s22, 1
      %p300 = scmp.lt.s32.totalorder %s23, 0
      %s301 = scalar_select %p300, %s23, 0
      %s302 = sadd.s32 %s301, %s299
      %s303 = smul.addr %s302, 8
      %s304 = scalar_lea.vmem %s7, %s303
      %p305 = scmp.eq.s32.totalorder %s23, 0
      // Predicated region
      $region49: #{_lambda_.3} parent=47 // pred_check
        %p306 = pneg %p305
      $region50: #{_lambda_.3} parent=47 // pred_check_branch
        %308 = sbr.rel (%p306) target = $region52
      $region51: #{_lambda_.3} parent=47 // pred_region
        %309 = vst [vmem:[#allocation2] sm:$0xff] 0.0
        %310 = vst [vmem:[#allocation3] sm:$0xff] 0.0
      $region52: #{_lambda_.3} parent=47 // pred_fallthru
        _
      %v311 = vld [vmem:[%s297] sm:$0xff]
      %v312 = vld [vmem:[#allocation2] sm:$0xff]
      %313 = vst [vmem:[#allocation2] sm:$0xff] %v311
      %315 = vrot.lane.b32.xlu0 %v311, 127
      %v316 = vpop.permute.xlu0 %315
      %v317 = vld [vmem:[%s1] sm:$0xff]
      %v318 = vld [vmem:[%s2] sm:$0xff]
      %320 = vset.pattern.permute.xlu0 0
      %321 = vperm.xlu0 %320, %v318
      %v322 = vpop.permute.xlu0 %321
      %325 = vrot.lane.b32.xlu0 %v312, 1
      %v326 = vpop.permute.xlu0 %325
      %327 = vrot.lane.b32.xlu0 %v311, 1
      %v328 = vpop.permute.xlu0 %327
      %329 = vrot.lane.b32.xlu0 %v316, 1
      %v330 = vpop.permute.xlu0 %329
      %vm331 = vcmask 7168
      %v332 = vsel %vm331, %v326, %v328
      %vm335 = vcmask 130048
      %v337 = vsel %vm335, %v317, 0
      %339 = vmatprep.subr.mxu0 0.0
      %340 = vmatpush1.msra.mxu0 %v332
      %341 = vmatprep.subr.mxu0 0.0
      %342 = vmatpush1.msra.mxu0 %v330
      %343 = vmatprep.subr.mxu0 0.0
      %344 = vmatpush1.msra.mxu0 0.0
      %345 = vmatprep.subr.mxu0 0.0
      %346 = vmatpush1.msra.mxu0 0.0
      %347 = vmatprep.subr.mxu0 0.0
      %348 = vmatpush1.msra.mxu0 0.0
      %349 = vmatprep.subr.mxu0 0.0
      %350 = vmatpush1.msra.mxu0 0.0
      %351 = vmatprep.subr.mxu0 0.0
      %352 = vmatpush1.msra.mxu0 0.0
      %353 = vmatprep.subr.mxu0 0.0
      %354 = vmatpush1.msra.mxu0 0.0
      %355 = vmatprep.subr.mxu0 0.0
      %356 = vmatpush1.msra.mxu0 0.0
      %357 = vmatprep.subr.mxu0 0.0
      %358 = vmatpush1.msra.mxu0 0.0
      %359 = vmatprep.subr.mxu0 0.0
      %360 = vmatpush1.msra.mxu0 0.0
      %361 = vmatprep.subr.mxu0 0.0
      %362 = vmatpush1.msra.mxu0 0.0
      %363 = vmatprep.subr.mxu0 0.0
      %364 = vmatpush1.msra.mxu0 0.0
      %365 = vmatprep.subr.mxu0 0.0
      %366 = vmatpush1.msra.mxu0 0.0
      %367 = vmatprep.subr.mxu0 0.0
      %368 = vmatpush1.msra.mxu0 0.0
      %369 = vmatprep.subr.mxu0 0.0
      %370 = vmatpush1.msra.mxu0 0.0
      %371 = vmatprep.subr.mxu0 0.0
      %372 = vmatpush1.msra.mxu0 0.0
      %373 = vmatprep.subr.mxu0 0.0
      %374 = vmatpush1.msra.mxu0 0.0
      %375 = vmatprep.subr.mxu0 0.0
      %376 = vmatpush1.msra.mxu0 0.0
      %377 = vmatprep.subr.mxu0 0.0
      %378 = vmatpush1.msra.mxu0 0.0
      %379 = vmatprep.subr.mxu0 0.0
      %380 = vmatpush1.msra.mxu0 0.0
      %381 = vmatprep.subr.mxu0 0.0
      %382 = vmatpush1.msra.mxu0 0.0
      %383 = vmatprep.subr.mxu0 0.0
      %384 = vmatpush1.msra.mxu0 0.0
      %385 = vmatprep.subr.mxu0 0.0
      %386 = vmatpush1.msra.mxu0 0.0
      %387 = vmatprep.subr.mxu0 0.0
      %388 = vmatpush1.msra.mxu0 0.0
      %389 = vmatprep.subr.mxu0 0.0
      %390 = vmatpush1.msra.mxu0 0.0
      %391 = vmatprep.subr.mxu0 0.0
      %392 = vmatpush1.msra.mxu0 0.0
      %393 = vmatprep.subr.mxu0 0.0
      %394 = vmatpush1.msra.mxu0 0.0
      %395 = vmatprep.subr.mxu0 0.0
      %396 = vmatpush1.msra.mxu0 0.0
      %397 = vmatprep.subr.mxu0 0.0
      %398 = vmatpush1.msra.mxu0 0.0
      %399 = vmatprep.subr.mxu0 0.0
      %400 = vmatpush1.msra.mxu0 0.0
      %401 = vmatprep.subr.mxu0 0.0
      %402 = vmatpush1.msra.mxu0 0.0
      %403 = vmatprep.mubr.f32.mxu0 0.0
      %404 = vmatmul.mubr.f32.gmra.mrb[0].mxu0 %v337
      %v405 = vpop.f32.mrb[0].mxu0
      %v406 = vadd.f32 %v322, %v405
      %v407 = vpop.f32.mrb[0].mxu0
      %408 = vdwg.mxu0
      %v409 = vmax.f32 %v406, 0.0
      %v410 = vld [vmem:[#allocation3] sm:$0xff]
      %411 = vst [vmem:[#allocation3] sm:$0xff] %v409
      %413 = vrot.lane.b32.xlu0 %v409, 127
      %v414 = vpop.permute.xlu0 %413
      %v415 = vld [vmem:[%s3] sm:$0xff]
      %v416 = vld [vmem:[%s4] sm:$0xff]
      %418 = vset.pattern.permute.xlu0 0
      %419 = vperm.xlu0 %418, %v416
      %v420 = vpop.permute.xlu0 %419
      %423 = vrot.lane.b32.xlu0 %v410, 1
      %v424 = vpop.permute.xlu0 %423
      %425 = vrot.lane.b32.xlu0 %v409, 1
      %v426 = vpop.permute.xlu0 %425
      %427 = vrot.lane.b32.xlu0 %v414, 1
      %v428 = vpop.permute.xlu0 %427
      %v429 = vsel %vm331, %v424, %v426
      %v433 = vsel %vm335, %v415, 0
      %435 = vmatprep.subr.mxu0 0.0
      %436 = vmatpush1.msra.mxu0 %v429
      %437 = vmatprep.subr.mxu0 0.0
      %438 = vmatpush1.msra.mxu0 %v428
      %439 = vmatprep.subr.mxu0 0.0
      %440 = vmatpush1.msra.mxu0 0.0
      %441 = vmatprep.subr.mxu0 0.0
      %442 = vmatpush1.msra.mxu0 0.0
      %443 = vmatprep.subr.mxu0 0.0
      %444 = vmatpush1.msra.mxu0 0.0
      %445 = vmatprep.subr.mxu0 0.0
      %446 = vmatpush1.msra.mxu0 0.0
      %447 = vmatprep.subr.mxu0 0.0
      %448 = vmatpush1.msra.mxu0 0.0
      %449 = vmatprep.subr.mxu0 0.0
      %450 = vmatpush1.msra.mxu0 0.0
      %451 = vmatprep.subr.mxu0 0.0
      %452 = vmatpush1.msra.mxu0 0.0
      %453 = vmatprep.subr.mxu0 0.0
      %454 = vmatpush1.msra.mxu0 0.0
      %455 = vmatprep.subr.mxu0 0.0
      %456 = vmatpush1.msra.mxu0 0.0
      %457 = vmatprep.subr.mxu0 0.0
      %458 = vmatpush1.msra.mxu0 0.0
      %459 = vmatprep.subr.mxu0 0.0
      %460 = vmatpush1.msra.mxu0 0.0
      %461 = vmatprep.subr.mxu0 0.0
      %462 = vmatpush1.msra.mxu0 0.0
      %463 = vmatprep.subr.mxu0 0.0
      %464 = vmatpush1.msra.mxu0 0.0
      %465 = vmatprep.subr.mxu0 0.0
      %466 = vmatpush1.msra.mxu0 0.0
      %467 = vmatprep.subr.mxu0 0.0
      %468 = vmatpush1.msra.mxu0 0.0
      %469 = vmatprep.subr.mxu0 0.0
      %470 = vmatpush1.msra.mxu0 0.0
      %471 = vmatprep.subr.mxu0 0.0
      %472 = vmatpush1.msra.mxu0 0.0
      %473 = vmatprep.subr.mxu0 0.0
      %474 = vmatpush1.msra.mxu0 0.0
      %475 = vmatprep.subr.mxu0 0.0
      %476 = vmatpush1.msra.mxu0 0.0
      %477 = vmatprep.subr.mxu0 0.0
      %478 = vmatpush1.msra.mxu0 0.0
      %479 = vmatprep.subr.mxu0 0.0
      %480 = vmatpush1.msra.mxu0 0.0
      %481 = vmatprep.subr.mxu0 0.0
      %482 = vmatpush1.msra.mxu0 0.0
      %483 = vmatprep.subr.mxu0 0.0
      %484 = vmatpush1.msra.mxu0 0.0
      %485 = vmatprep.subr.mxu0 0.0
      %486 = vmatpush1.msra.mxu0 0.0
      %487 = vmatprep.subr.mxu0 0.0
      %488 = vmatpush1.msra.mxu0 0.0
      %489 = vmatprep.subr.mxu0 0.0
      %490 = vmatpush1.msra.mxu0 0.0
      %491 = vmatprep.subr.mxu0 0.0
      %492 = vmatpush1.msra.mxu0 0.0
      %493 = vmatprep.subr.mxu0 0.0
      %494 = vmatpush1.msra.mxu0 0.0
      %495 = vmatprep.subr.mxu0 0.0
      %496 = vmatpush1.msra.mxu0 0.0
      %497 = vmatprep.subr.mxu0 0.0
      %498 = vmatpush1.msra.mxu0 0.0
      %499 = vmatprep.mubr.f32.mxu0 0.0
      %500 = vmatmul.mubr.f32.gmra.mrb[0].mxu0 %v433
      %v501 = vpop.f32.mrb[0].mxu0
      %v502 = vadd.f32 %v420, %v501
      %v503 = vpop.f32.mrb[0].mxu0
      %504 = vdwg.mxu0
      %v505 = vmax.f32 %v502, 0.0
      %v506 = vld [vmem:[%s5] sm:$0xff]
      %v507 = vld [vmem:[%s6] sm:$0xff]
      %509 = vset.pattern.permute.xlu0 0
      %510 = vperm.xlu0 %509, %v507
      %v511 = vpop.permute.xlu0 %510
      %vm513 = vcmask 64512
      %v515 = vsel %vm513, %v506, 0
      %517 = vmatprep.subr.mxu0 0.0
      %518 = vmatpush1.msra.mxu0 %v311
      %519 = vmatprep.subr.mxu0 0.0
      %520 = vmatpush1.msra.mxu0 0.0
      %521 = vmatprep.subr.mxu0 0.0
      %522 = vmatpush1.msra.mxu0 0.0
      %523 = vmatprep.subr.mxu0 0.0
      %524 = vmatpush1.msra.mxu0 0.0
      %525 = vmatprep.subr.mxu0 0.0
      %526 = vmatpush1.msra.mxu0 0.0
      %527 = vmatprep.subr.mxu0 0.0
      %528 = vmatpush1.msra.mxu0 0.0
      %529 = vmatprep.subr.mxu0 0.0
      %530 = vmatpush1.msra.mxu0 0.0
      %531 = vmatprep.subr.mxu0 0.0
      %532 = vmatpush1.msra.mxu0 0.0
      %533 = vmatprep.subr.mxu0 0.0
      %534 = vmatpush1.msra.mxu0 0.0
      %535 = vmatprep.subr.mxu0 0.0
      %536 = vmatpush1.msra.mxu0 0.0
      %537 = vmatprep.subr.mxu0 0.0
      %538 = vmatpush1.msra.mxu0 0.0
      %539 = vmatprep.subr.mxu0 0.0
      %540 = vmatpush1.msra.mxu0 0.0
      %541 = vmatprep.subr.mxu0 0.0
      %542 = vmatpush1.msra.mxu0 0.0
      %543 = vmatprep.subr.mxu0 0.0
      %544 = vmatpush1.msra.mxu0 0.0
      %545 = vmatprep.subr.mxu0 0.0
      %546 = vmatpush1.msra.mxu0 0.0
      %547 = vmatprep.subr.mxu0 0.0
      %548 = vmatpush1.msra.mxu0 0.0
      %549 = vmatprep.subr.mxu0 0.0
      %550 = vmatpush1.msra.mxu0 0.0
      %551 = vmatprep.subr.mxu0 0.0
      %552 = vmatpush1.msra.mxu0 0.0
      %553 = vmatprep.subr.mxu0 0.0
      %554 = vmatpush1.msra.mxu0 0.0
      %555 = vmatprep.subr.mxu0 0.0
      %556 = vmatpush1.msra.mxu0 0.0
      %557 = vmatprep.subr.mxu0 0.0
      %558 = vmatpush1.msra.mxu0 0.0
      %559 = vmatprep.subr.mxu0 0.0
      %560 = vmatpush1.msra.mxu0 0.0
      %561 = vmatprep.subr.mxu0 0.0
      %562 = vmatpush1.msra.mxu0 0.0
      %563 = vmatprep.subr.mxu0 0.0
      %564 = vmatpush1.msra.mxu0 0.0
      %565 = vmatprep.subr.mxu0 0.0
      %566 = vmatpush1.msra.mxu0 0.0
      %567 = vmatprep.subr.mxu0 0.0
      %568 = vmatpush1.msra.mxu0 0.0
      %569 = vmatprep.subr.mxu0 0.0
      %570 = vmatpush1.msra.mxu0 0.0
      %571 = vmatprep.subr.mxu0 0.0
      %572 = vmatpush1.msra.mxu0 0.0
      %573 = vmatprep.subr.mxu0 0.0
      %574 = vmatpush1.msra.mxu0 0.0
      %575 = vmatprep.subr.mxu0 0.0
      %576 = vmatpush1.msra.mxu0 0.0
      %577 = vmatprep.subr.mxu0 0.0
      %578 = vmatpush1.msra.mxu0 0.0
      %579 = vmatprep.subr.mxu0 0.0
      %580 = vmatpush1.msra.mxu0 0.0
      %581 = vmatprep.mubr.f32.mxu0 0.0
      %582 = vmatmul.mubr.f32.gmra.mrb[0].mxu0 %v515
      %v583 = vpop.f32.mrb[0].mxu0
      %v584 = vadd.f32 %v511, %v583
      %v585 = vpop.f32.mrb[0].mxu0
      %586 = vdwg.mxu0
      %v587 = vadd.f32 %v505, %v584
      %v588 = vmax.f32 %v587, 0.0
      %589 = vst [vmem:[%s304] sm:$0xff] %v588
      %p590 = scmp.lt.s32.totalorder %s22, 1
      %s591 = scalar_select %p590, %s22, 1
      %p592 = scmp.lt.s32.totalorder %s23, 0
      %s593 = scalar_select %p592, %s23, 0
      %s594 = sadd.s32 %s593, %s591
      %s595 = smul.addr %s594, 8
      %s596 = scalar_lea.vmem %s7, %s595
      // Predicated region
      $region53: #{_lambda_.3} parent=47 // pred_check
        %p597 = pneg %p204
      $region54: #{_lambda_.3} parent=47 // pred_check_branch
        %599 = sbr.rel (%p597) target = $region56
      $region55: #{_lambda_.3} parent=47 // pred_region
        _
      $region56: #{_lambda_.3} parent=47 // pred_fallthru
        _
    $region48: #{_lambda_.3} parent=5 // pred_fallthru
      _
    %p600 = scmp.le.s32.totalorder 2, %s13
    // Predicated region
    $region57: #{_lambda_.3} parent=5 // pred_check
      %p601 = pneg %p600
    $region58: #{_lambda_.3} parent=5 // pred_check_branch
      %603 = sbr.rel (%p601) target = $region60
    $region59: #{_lambda_.3} parent=5 // pred_region
      %s604 = ssub.s32 %s13, 2
      // Predicated region
      $region61: #{_lambda_.3} parent=59 // pred_check
        %p605 = pneg %p210
      $region62: #{_lambda_.3} parent=59 // pred_check_branch
        %607 = sbr.rel (%p605) target = $region64
      $region63: #{_lambda_.3} parent=59 // pred_region
        %p608 = scmp.lt.s32.totalorder %s24, 1
        %s609 = scalar_select %p608, %s24, 1
        %p610 = scmp.lt.s32.totalorder %s25, 0
        %s611 = scalar_select %p610, %s25, 0
        %s612 = sadd.s32 %s611, %s609
        %s613 = smul.addr %s612, 8
        %s614 = scalar_lea.vmem %s7, %s613
      $region64: #{_lambda_.3} parent=59 // pred_fallthru
        _
    $region60: #{_lambda_.3} parent=5 // pred_fallthru
      _
  $region6: #{_lambda_.3} parent=0 // loop_footer
    %s17 = sadd.s32 1, %s13
  $region7: #{_lambda_.3} parent=0 // loop_footer_branch
    %12 = sbr.rel target = $region3
  $region8: #{_lambda_.3} parent=0 // loop_exit
    _

// kernel: _lambda_.4
$region0: #{_lambda_.4}
  #allocation0 [shape = 'u32[]', space=smem, size = 0x4, offset = 0x4, fixed_abs, tag = 'smem constant byte address 0x4 - core index']
  #allocation1 [shape = 'u32[144,128]{1,0:T(1,128)}', space=vmem, size = 0x12000, scoped, tag = 'internal scratch']
  #allocation2 [shape = 'f32[8,128]{1,0:T(8,128)}', space=vmem, size = 0x1000, scoped, tag = 'scratch operand']
  #allocation3 [shape = 'f32[8,128]{1,0:T(8,128)}', space=vmem, size = 0x1000, scoped, tag = 'scratch operand']
  %s0 = inlined_call_operand.vmem [shape: f32[2,8,128], index: 0, kind: input, shape index: {}]
  %s1 = inlined_call_operand.vmem [shape: f32[8,16], index: 1, kind: input, shape index: {}]
  %s2 = inlined_call_operand.vmem [shape: f32[8,1], index: 2, kind: input, shape index: {}]
  %s3 = inlined_call_operand.vmem [shape: f32[8,16], index: 3, kind: input, shape index: {}]
  %s4 = inlined_call_operand.vmem [shape: f32[8,1], index: 4, kind: input, shape index: {}]
  %s5 = inlined_call_operand.vmem [shape: f32[2,8,128], index: 5, kind: output, shape index: {}]
  %s6 = sld [smem:[#allocation0]]
  $region57: #{_lambda_.4} parent=0
    _
  %s8 = ssub.s32 1, %s6
  %s9 = scalar_select 0, %s8, %s6
  loop: start=0, step=1, limit=4
  $region2: #{_lambda_.4} parent=0 // loop_pre_header
    _
  $region3: #{_lambda_.4} parent=0 // loop_header
    %s11 = sphi 0, %s15
    %p12 = scmp.ge.s32.totalorder %s11, 4
    %s18 = sphi 0, %s30
    %s19 = sphi 0, %s26
    %s20 = sphi 0, %s18
    %s21 = sphi 0, %s19
    %s22 = sphi 0, %s20
    %s23 = sphi 0, %s21
    %s35 = sphi 0, %s37
    %s38 = sphi 0, %s35
    %s39 = sphi 0, %s38
    %s55 = sphi 0, %s39
    %s59 = sphi 0, %s59
    %s61 = sphi 0, %s59
    %s62 = sphi 0, %s61
    %s76 = sphi 0, %s62
    %s80 = sphi 0, %s80
    %s82 = sphi 0, %s80
    %s83 = sphi 0, %s82
    %s97 = sphi 0, %s83
    %s101 = sphi 0, %s101
    %s103 = sphi 0, %s101
    %s104 = sphi 0, %s103
    %s118 = sphi 0, %s104
    %s122 = sphi 0, %s122
    %s124 = sphi 0, %s122
    %s125 = sphi 0, %s124
    %s139 = sphi 0, %s125
    %s147 = sphi 0, %s149
    %s150 = sphi 0, %s147
    %s151 = sphi 0, %s150
    %s167 = sphi 0, %s151
  $region4: #{_lambda_.4} parent=0 // loop_header_branch
    %14 = sbr.rel (%p12) target = $region8
  $region5: #{_lambda_.4} parent=0 // loop_body
    %s16 = ssub.s32 %s11, 1
    %s17 = ssub.s32 %s11, 2
    %s24 = sadd.s32 1, %s19
    %p25 = scmp.ge.s32.totalorder %s24, 1
    %s26 = scalar_select %p25, 0, %s24
    %s27 = sadd.s32 1, %s18
    %s28 = scalar_select %p25, %s27, %s18
    %p29 = scmp.ge.s32.totalorder %s28, 2
    %s30 = scalar_select %p29, 0, %s28
    %s31 = ssub.s32 %s18, %s30
    %s32 = ssub.s32 %s19, %s26
    %s33 = sor.u32 %s31, %s32
    %p34 = scmp.eq.s32.totalorder %s33, 0
    %s36 = sadd.s32 %s35, 1
    %s37 = scalar_select %p34, %s35, %s36
    %p40 = pneg %p34
    %p41 = scmp.eq.s32.totalorder %s11, 1
    %p42 = por %p40, %p41
    %p43 = scmp.ne.s32.totalorder %s35, %s38
    %p44 = scmp.eq.s32.totalorder %s11, 0
    %p45 = por %p43, %p44
    %p46 = scmp.ne.s32.totalorder %s35, %s38
    %p47 = scmp.eq.s32.totalorder %s16, 1
    %p48 = por %p46, %p47
    %p49 = scmp.ne.s32.totalorder %s38, %s39
    %p50 = scmp.eq.s32.totalorder %s16, 0
    %p51 = por %p49, %p50
    %p52 = scmp.ne.s32.totalorder %s38, %s39
    %p53 = scmp.eq.s32.totalorder %s17, 1
    %p54 = por %p52, %p53
    %p56 = scmp.ne.s32.totalorder %s39, %s55
    %p57 = scmp.eq.s32.totalorder %s17, 0
    %p58 = por %p56, %p57
    %s60 = sadd.s32 %s59, 1
    %p63 = scmp.eq.s32.totalorder %s11, 1
    %p64 = scmp.ne.s32.totalorder %s59, %s61
    %p65 = scmp.eq.s32.totalorder %s11, 0
    %p66 = por %p64, %p65
    %p67 = scmp.ne.s32.totalorder %s59, %s61
    %p68 = scmp.eq.s32.totalorder %s16, 1
    %p69 = por %p67, %p68
    %p70 = scmp.ne.s32.totalorder %s61, %s62
    %p71 = scmp.eq.s32.totalorder %s16, 0
    %p72 = por %p70, %p71
    %p73 = scmp.ne.s32.totalorder %s61, %s62
    %p74 = scmp.eq.s32.totalorder %s17, 1
    %p75 = por %p73, %p74
    %p77 = scmp.ne.s32.totalorder %s62, %s76
    %p78 = scmp.eq.s32.totalorder %s17, 0
    %p79 = por %p77, %p78
    %s81 = sadd.s32 %s80, 1
    %p84 = scmp.eq.s32.totalorder %s11, 1
    %p85 = scmp.ne.s32.totalorder %s80, %s82
    %p86 = scmp.eq.s32.totalorder %s11, 0
    %p87 = por %p85, %p86
    %p88 = scmp.ne.s32.totalorder %s80, %s82
    %p89 = scmp.eq.s32.totalorder %s16, 1
    %p90 = por %p88, %p89
    %p91 = scmp.ne.s32.totalorder %s82, %s83
    %p92 = scmp.eq.s32.totalorder %s16, 0
    %p93 = por %p91, %p92
    %p94 = scmp.ne.s32.totalorder %s82, %s83
    %p95 = scmp.eq.s32.totalorder %s17, 1
    %p96 = por %p94, %p95
    %p98 = scmp.ne.s32.totalorder %s83, %s97
    %p99 = scmp.eq.s32.totalorder %s17, 0
    %p100 = por %p98, %p99
    %s102 = sadd.s32 %s101, 1
    %p105 = scmp.eq.s32.totalorder %s11, 1
    %p106 = scmp.ne.s32.totalorder %s101, %s103
    %p107 = scmp.eq.s32.totalorder %s11, 0
    %p108 = por %p106, %p107
    %p109 = scmp.ne.s32.totalorder %s101, %s103
    %p110 = scmp.eq.s32.totalorder %s16, 1
    %p111 = por %p109, %p110
    %p112 = scmp.ne.s32.totalorder %s103, %s104
    %p113 = scmp.eq.s32.totalorder %s16, 0
    %p114 = por %p112, %p113
    %p115 = scmp.ne.s32.totalorder %s103, %s104
    %p116 = scmp.eq.s32.totalorder %s17, 1
    %p117 = por %p115, %p116
    %p119 = scmp.ne.s32.totalorder %s104, %s118
    %p120 = scmp.eq.s32.totalorder %s17, 0
    %p121 = por %p119, %p120
    %s123 = sadd.s32 %s122, 1
    %p126 = scmp.eq.s32.totalorder %s11, 1
    %p127 = scmp.ne.s32.totalorder %s122, %s124
    %p128 = scmp.eq.s32.totalorder %s11, 0
    %p129 = por %p127, %p128
    %p130 = scmp.ne.s32.totalorder %s122, %s124
    %p131 = scmp.eq.s32.totalorder %s16, 1
    %p132 = por %p130, %p131
    %p133 = scmp.ne.s32.totalorder %s124, %s125
    %p134 = scmp.eq.s32.totalorder %s16, 0
    %p135 = por %p133, %p134
    %p136 = scmp.ne.s32.totalorder %s124, %s125
    %p137 = scmp.eq.s32.totalorder %s17, 1
    %p138 = por %p136, %p137
    %p140 = scmp.ne.s32.totalorder %s125, %s139
    %p141 = scmp.eq.s32.totalorder %s17, 0
    %p142 = por %p140, %p141
    %s143 = ssub.s32 %s18, %s30
    %s144 = ssub.s32 %s19, %s26
    %s145 = sor.u32 %s143, %s144
    %p146 = scmp.eq.s32.totalorder %s145, 0
    %s148 = sadd.s32 %s147, 1
    %s149 = scalar_select %p146, %s147, %s148
    %p152 = pneg %p146
    %p153 = scmp.eq.s32.totalorder %s11, 1
    %p154 = por %p152, %p153
    %p155 = scmp.ne.s32.totalorder %s147, %s150
    %p156 = scmp.eq.s32.totalorder %s11, 0
    %p157 = por %p155, %p156
    %p158 = scmp.ne.s32.totalorder %s147, %s150
    %p159 = scmp.eq.s32.totalorder %s16, 1
    %p160 = por %p158, %p159
    %p161 = scmp.ne.s32.totalorder %s150, %s151
    %p162 = scmp.eq.s32.totalorder %s16, 0
    %p163 = por %p161, %p162
    %p164 = scmp.ne.s32.totalorder %s150, %s151
    %p165 = scmp.eq.s32.totalorder %s17, 1
    %p166 = por %p164, %p165
    %p168 = scmp.ne.s32.totalorder %s151, %s167
    %p169 = scmp.eq.s32.totalorder %s17, 0
    %p170 = por %p168, %p169
    %p171 = scmp.le.s32.totalorder 1, %s11
    %p172 = scmp.lt.s32.totalorder %s11, 3
    %p173 = pnand %p171, %p172
    %p174 = pneg %p173
    // Predicated region
    $region9: #{_lambda_.4} parent=5 // pred_check
      _
    $region10: #{_lambda_.4} parent=5 // pred_check_branch
      %176 = sbr.rel (%p173) target = $region12
    $region11: #{_lambda_.4} parent=5 // pred_region
      %s177 = ssub.s32 %s11, 1
      // Predicated region
      $region13: #{_lambda_.4} parent=11 // pred_check
        %p178 = pneg %p72
      $region14: #{_lambda_.4} parent=11 // pred_check_branch
        %180 = sbr.rel (%p178) target = $region16
      $region15: #{_lambda_.4} parent=11 // pred_region
        _
      $region16: #{_lambda_.4} parent=11 // pred_fallthru
        _
      // Predicated region
      $region17: #{_lambda_.4} parent=11 // pred_check
        %p181 = pneg %p93
      $region18: #{_lambda_.4} parent=11 // pred_check_branch
        %183 = sbr.rel (%p181) target = $region20
      $region19: #{_lambda_.4} parent=11 // pred_region
        _
      $region20: #{_lambda_.4} parent=11 // pred_fallthru
        _
      // Predicated region
      $region21: #{_lambda_.4} parent=11 // pred_check
        %p184 = pneg %p114
      $region22: #{_lambda_.4} parent=11 // pred_check_branch
        %186 = sbr.rel (%p184) target = $region24
      $region23: #{_lambda_.4} parent=11 // pred_region
        _
      $region24: #{_lambda_.4} parent=11 // pred_fallthru
        _
      // Predicated region
      $region25: #{_lambda_.4} parent=11 // pred_check
        %p187 = pneg %p135
      $region26: #{_lambda_.4} parent=11 // pred_check_branch
        %189 = sbr.rel (%p187) target = $region28
      $region27: #{_lambda_.4} parent=11 // pred_region
        _
      $region28: #{_lambda_.4} parent=11 // pred_fallthru
        _
    $region12: #{_lambda_.4} parent=5 // pred_fallthru
      _
    %p190 = scmp.lt.s32.totalorder %s11, 2
    // Predicated region
    $region29: #{_lambda_.4} parent=5 // pred_check
      %p191 = pneg %p190
    $region30: #{_lambda_.4} parent=5 // pred_check_branch
      %193 = sbr.rel (%p191) target = $region32
    $region31: #{_lambda_.4} parent=5 // pred_region
      // Predicated region
      $region33: #{_lambda_.4} parent=31 // pred_check
        %p194 = pneg %p45
      $region34: #{_lambda_.4} parent=31 // pred_check_branch
        %196 = sbr.rel (%p194) target = $region36
      $region35: #{_lambda_.4} parent=31 // pred_region
        %p197 = scmp.lt.s32.totalorder %s18, 1
        %s198 = scalar_select %p197, %s18, 1
        %p199 = scmp.lt.s32.totalorder %s19, 0
        %s200 = scalar_select %p199, %s19, 0
        %s201 = sadd.s32 %s200, %s198
        %s202 = smul.addr %s201, 8
        %s203 = scalar_lea.vmem %s0, %s202
      $region36: #{_lambda_.4} parent=31 // pred_fallthru
        _
    $region32: #{_lambda_.4} parent=5 // pred_fallthru
      _
    %p204 = scmp.le.s32.totalorder 1, %s11
    %p205 = scmp.lt.s32.totalorder %s11, 3
    %p206 = pnand %p204, %p205
    %p207 = pneg %p206
    // Predicated region
    $region37: #{_lambda_.4} parent=5 // pred_check
      _
    $region38: #{_lambda_.4} parent=5 // pred_check_branch
      %209 = sbr.rel (%p206) target = $region40
    $region39: #{_lambda_.4} parent=5 // pred_region
      %s210 = ssub.s32 %s11, 1
      %p211 = scmp.lt.s32.totalorder %s20, 1
      %s212 = scalar_select %p211, %s20, 1
      %p213 = scmp.lt.s32.totalorder %s21, 0
      %s214 = scalar_select %p213, %s21, 0
      %s215 = sadd.s32 %s214, %s212
      %s216 = smul.addr %s215, 8
      %s217 = scalar_lea.vmem %s0, %s216
      %p218 = pneg %p51
      %p219 = pneg %p48
      %p220 = pneg %p72
      %p221 = pneg %p69
      %p222 = pneg %p93
      %p223 = pneg %p90
      %p224 = pneg %p114
      %p225 = pneg %p111
      %p226 = pneg %p135
      %p227 = pneg %p132
      %p228 = pneg %p163
      %p229 = pneg %p160
      %p230 = scmp.lt.s32.totalorder %s20, 1
      %s231 = scalar_select %p230, %s20, 1
      %p232 = scmp.lt.s32.totalorder %s21, 0
      %s233 = scalar_select %p232, %s21, 0
      %s234 = sadd.s32 %s233, %s231
      %s235 = smul.addr %s234, 8
      %s236 = scalar_lea.vmem %s5, %s235
      %p237 = scmp.lt.s32.totalorder %s20, 1
      %s238 = scalar_select %p237, %s20, 1
      %p239 = scmp.lt.s32.totalorder %s21, 0
      %s240 = scalar_select %p239, %s21, 0
      %s241 = sadd.s32 %s240, %s238
      %s242 = smul.addr %s241, 8
      %s243 = scalar_lea.vmem %s0, %s242
      %p244 = scmp.lt.s32.totalorder %s20, 1
      %s245 = scalar_select %p244, %s20, 1
      %p246 = scmp.lt.s32.totalorder %s21, 0
      %s247 = scalar_select %p246, %s21, 0
      %s248 = sadd.s32 %s247, %s245
      %s249 = smul.addr %s248, 8
      %s250 = scalar_lea.vmem %s5, %s249
      %p251 = scmp.eq.s32.totalorder %s21, 0
      // Predicated region
      $region41: #{_lambda_.4} parent=39 // pred_check
        %p252 = pneg %p251
      $region42: #{_lambda_.4} parent=39 // pred_check_branch
        %254 = sbr.rel (%p252) target = $region44
      $region43: #{_lambda_.4} parent=39 // pred_region
        %255 = vst [vmem:[#allocation2] sm:$0xff] 0.0
        %256 = vst [vmem:[#allocation3] sm:$0xff] 0.0
      $region44: #{_lambda_.4} parent=39 // pred_fallthru
        _
      %v257 = vld [vmem:[%s243] sm:$0xff]
      %v258 = vld [vmem:[#allocation2] sm:$0xff]
      %259 = vst [vmem:[#allocation2] sm:$0xff] %v257
      %261 = vrot.lane.b32.xlu0 %v257, 126
      %v262 = vpop.permute.xlu0 %261
      %v263 = vld [vmem:[%s1] sm:$0xff]
      %v264 = vld [vmem:[%s2] sm:$0xff]
      %266 = vset.pattern.permute.xlu0 0
      %267 = vperm.xlu0 %266, %v264
      %v268 = vpop.permute.xlu0 %267
      %271 = vrot.lane.b32.xlu0 %v258, 2
      %v272 = vpop.permute.xlu0 %271
      %273 = vrot.lane.b32.xlu0 %v257, 2
      %v274 = vpop.permute.xlu0 %273
      %275 = vrot.lane.b32.xlu0 %v262, 2
      %v276 = vpop.permute.xlu0 %275
      %vm277 = vcmask 15360
      %v278 = vsel %vm277, %v272, %v274
      %vm281 = vcmask 130048
      %v283 = vsel %vm281, %v263, 0
      %285 = vmatprep.subr.mxu0 0.0
      %286 = vmatpush1.msra.mxu0 %v278
      %287 = vmatprep.subr.mxu0 0.0
      %288 = vmatpush1.msra.mxu0 %v276
      %289 = vmatprep.subr.mxu0 0.0
      %290 = vmatpush1.msra.mxu0 0.0
      %291 = vmatprep.subr.mxu0 0.0
      %292 = vmatpush1.msra.mxu0 0.0
      %293 = vmatprep.subr.mxu0 0.0
      %294 = vmatpush1.msra.mxu0 0.0
      %295 = vmatprep.subr.mxu0 0.0
      %296 = vmatpush1.msra.mxu0 0.0
      %297 = vmatprep.subr.mxu0 0.0
      %298 = vmatpush1.msra.mxu0 0.0
      %299 = vmatprep.subr.mxu0 0.0
      %300 = vmatpush1.msra.mxu0 0.0
      %301 = vmatprep.subr.mxu0 0.0
      %302 = vmatpush1.msra.mxu0 0.0
      %303 = vmatprep.subr.mxu0 0.0
      %304 = vmatpush1.msra.mxu0 0.0
      %305 = vmatprep.subr.mxu0 0.0
      %306 = vmatpush1.msra.mxu0 0.0
      %307 = vmatprep.subr.mxu0 0.0
      %308 = vmatpush1.msra.mxu0 0.0
      %309 = vmatprep.subr.mxu0 0.0
      %310 = vmatpush1.msra.mxu0 0.0
      %311 = vmatprep.subr.mxu0 0.0
      %312 = vmatpush1.msra.mxu0 0.0
      %313 = vmatprep.subr.mxu0 0.0
      %314 = vmatpush1.msra.mxu0 0.0
      %315 = vmatprep.subr.mxu0 0.0
      %316 = vmatpush1.msra.mxu0 0.0
      %317 = vmatprep.subr.mxu0 0.0
      %318 = vmatpush1.msra.mxu0 0.0
      %319 = vmatprep.subr.mxu0 0.0
      %320 = vmatpush1.msra.mxu0 0.0
      %321 = vmatprep.subr.mxu0 0.0
      %322 = vmatpush1.msra.mxu0 0.0
      %323 = vmatprep.subr.mxu0 0.0
      %324 = vmatpush1.msra.mxu0 0.0
      %325 = vmatprep.subr.mxu0 0.0
      %326 = vmatpush1.msra.mxu0 0.0
      %327 = vmatprep.subr.mxu0 0.0
      %328 = vmatpush1.msra.mxu0 0.0
      %329 = vmatprep.subr.mxu0 0.0
      %330 = vmatpush1.msra.mxu0 0.0
      %331 = vmatprep.subr.mxu0 0.0
      %332 = vmatpush1.msra.mxu0 0.0
      %333 = vmatprep.subr.mxu0 0.0
      %334 = vmatpush1.msra.mxu0 0.0
      %335 = vmatprep.subr.mxu0 0.0
      %336 = vmatpush1.msra.mxu0 0.0
      %337 = vmatprep.subr.mxu0 0.0
      %338 = vmatpush1.msra.mxu0 0.0
      %339 = vmatprep.subr.mxu0 0.0
      %340 = vmatpush1.msra.mxu0 0.0
      %341 = vmatprep.subr.mxu0 0.0
      %342 = vmatpush1.msra.mxu0 0.0
      %343 = vmatprep.subr.mxu0 0.0
      %344 = vmatpush1.msra.mxu0 0.0
      %345 = vmatprep.subr.mxu0 0.0
      %346 = vmatpush1.msra.mxu0 0.0
      %347 = vmatprep.subr.mxu0 0.0
      %348 = vmatpush1.msra.mxu0 0.0
      %349 = vmatprep.mubr.f32.mxu0 0.0
      %350 = vmatmul.mubr.f32.gmra.mrb[0].mxu0 %v283
      %v351 = vpop.f32.mrb[0].mxu0
      %v352 = vadd.f32 %v268, %v351
      %v353 = vpop.f32.mrb[0].mxu0
      %354 = vdwg.mxu0
      %v355 = vmax.f32 %v352, 0.0
      %v356 = vld [vmem:[#allocation3] sm:$0xff]
      %357 = vst [vmem:[#allocation3] sm:$0xff] %v355
      %359 = vrot.lane.b32.xlu0 %v355, 126
      %v360 = vpop.permute.xlu0 %359
      %v361 = vld [vmem:[%s3] sm:$0xff]
      %v362 = vld [vmem:[%s4] sm:$0xff]
      %364 = vset.pattern.permute.xlu0 0
      %365 = vperm.xlu0 %364, %v362
      %v366 = vpop.permute.xlu0 %365
      %369 = vrot.lane.b32.xlu0 %v356, 2
      %v370 = vpop.permute.xlu0 %369
      %371 = vrot.lane.b32.xlu0 %v355, 2
      %v372 = vpop.permute.xlu0 %371
      %373 = vrot.lane.b32.xlu0 %v360, 2
      %v374 = vpop.permute.xlu0 %373
      %v375 = vsel %vm277, %v370, %v372
      %v379 = vsel %vm281, %v361, 0
      %381 = vmatprep.subr.mxu0 0.0
      %382 = vmatpush1.msra.mxu0 %v375
      %383 = vmatprep.subr.mxu0 0.0
      %384 = vmatpush1.msra.mxu0 %v374
      %385 = vmatprep.subr.mxu0 0.0
      %386 = vmatpush1.msra.mxu0 0.0
      %387 = vmatprep.subr.mxu0 0.0
      %388 = vmatpush1.msra.mxu0 0.0
      %389 = vmatprep.subr.mxu0 0.0
      %390 = vmatpush1.msra.mxu0 0.0
      %391 = vmatprep.subr.mxu0 0.0
      %392 = vmatpush1.msra.mxu0 0.0
      %393 = vmatprep.subr.mxu0 0.0
      %394 = vmatpush1.msra.mxu0 0.0
      %395 = vmatprep.subr.mxu0 0.0
      %396 = vmatpush1.msra.mxu0 0.0
      %397 = vmatprep.subr.mxu0 0.0
      %398 = vmatpush1.msra.mxu0 0.0
      %399 = vmatprep.subr.mxu0 0.0
      %400 = vmatpush1.msra.mxu0 0.0
      %401 = vmatprep.subr.mxu0 0.0
      %402 = vmatpush1.msra.mxu0 0.0
      %403 = vmatprep.subr.mxu0 0.0
      %404 = vmatpush1.msra.mxu0 0.0
      %405 = vmatprep.subr.mxu0 0.0
      %406 = vmatpush1.msra.mxu0 0.0
      %407 = vmatprep.subr.mxu0 0.0
      %408 = vmatpush1.msra.mxu0 0.0
      %409 = vmatprep.subr.mxu0 0.0
      %410 = vmatpush1.msra.mxu0 0.0
      %411 = vmatprep.subr.mxu0 0.0
      %412 = vmatpush1.msra.mxu0 0.0
      %413 = vmatprep.subr.mxu0 0.0
      %414 = vmatpush1.msra.mxu0 0.0
      %415 = vmatprep.subr.mxu0 0.0
      %416 = vmatpush1.msra.mxu0 0.0
      %417 = vmatprep.subr.mxu0 0.0
      %418 = vmatpush1.msra.mxu0 0.0
      %419 = vmatprep.subr.mxu0 0.0
      %420 = vmatpush1.msra.mxu0 0.0
      %421 = vmatprep.subr.mxu0 0.0
      %422 = vmatpush1.msra.mxu0 0.0
      %423 = vmatprep.subr.mxu0 0.0
      %424 = vmatpush1.msra.mxu0 0.0
      %425 = vmatprep.subr.mxu0 0.0
      %426 = vmatpush1.msra.mxu0 0.0
      %427 = vmatprep.subr.mxu0 0.0
      %428 = vmatpush1.msra.mxu0 0.0
      %429 = vmatprep.subr.mxu0 0.0
      %430 = vmatpush1.msra.mxu0 0.0
      %431 = vmatprep.subr.mxu0 0.0
      %432 = vmatpush1.msra.mxu0 0.0
      %433 = vmatprep.subr.mxu0 0.0
      %434 = vmatpush1.msra.mxu0 0.0
      %435 = vmatprep.subr.mxu0 0.0
      %436 = vmatpush1.msra.mxu0 0.0
      %437 = vmatprep.subr.mxu0 0.0
      %438 = vmatpush1.msra.mxu0 0.0
      %439 = vmatprep.subr.mxu0 0.0
      %440 = vmatpush1.msra.mxu0 0.0
      %441 = vmatprep.subr.mxu0 0.0
      %442 = vmatpush1.msra.mxu0 0.0
      %443 = vmatprep.subr.mxu0 0.0
      %444 = vmatpush1.msra.mxu0 0.0
      %445 = vmatprep.mubr.f32.mxu0 0.0
      %446 = vmatmul.mubr.f32.gmra.mrb[0].mxu0 %v379
      %v447 = vpop.f32.mrb[0].mxu0
      %v448 = vadd.f32 %v366, %v447
      %v449 = vpop.f32.mrb[0].mxu0
      %450 = vdwg.mxu0
      %v451 = vmax.f32 %v448, 0.0
      %v452 = vadd.f32 %v451, %v257
      %v453 = vmax.f32 %v452, 0.0
      %454 = vst [vmem:[%s250] sm:$0xff] %v453
      %p455 = scmp.lt.s32.totalorder %s20, 1
      %s456 = scalar_select %p455, %s20, 1
      %p457 = scmp.lt.s32.totalorder %s21, 0
      %s458 = scalar_select %p457, %s21, 0
      %s459 = sadd.s32 %s458, %s456
      %s460 = smul.addr %s459, 8
      %s461 = scalar_lea.vmem %s5, %s460
      // Predicated region
      $region45: #{_lambda_.4} parent=39 // pred_check
        %p462 = pneg %p160
      $region46: #{_lambda_.4} parent=39 // pred_check_branch
        %464 = sbr.rel (%p462) target = $region48
      $region47: #{_lambda_.4} parent=39 // pred_region
        _
      $region48: #{_lambda_.4} parent=39 // pred_fallthru
        _
    $region40: #{_lambda_.4} parent=5 // pred_fallthru
      _
    %p465 = scmp.le.s32.totalorder 2, %s11
    // Predicated region
    $region49: #{_lambda_.4} parent=5 // pred_check
      %p466 = pneg %p465
    $region50: #{_lambda_.4} parent=5 // pred_check_branch
      %468 = sbr.rel (%p466) target = $region52
    $region51: #{_lambda_.4} parent=5 // pred_region
      %s469 = ssub.s32 %s11, 2
      // Predicated region
      $region53: #{_lambda_.4} parent=51 // pred_check
        %p470 = pneg %p166
      $region54: #{_lambda_.4} parent=51 // pred_check_branch
        %472 = sbr.rel (%p470) target = $region56
      $region55: #{_lambda_.4} parent=51 // pred_region
        %p473 = scmp.lt.s32.totalorder %s22, 1
        %s474 = scalar_select %p473, %s22, 1
        %p475 = scmp.lt.s32.totalorder %s23, 0
        %s476 = scalar_select %p475, %s23, 0
        %s477 = sadd.s32 %s476, %s474
        %s478 = smul.addr %s477, 8
        %s479 = scalar_lea.vmem %s5, %s478
      $region56: #{_lambda_.4} parent=51 // pred_fallthru
        _
    $region52: #{_lambda_.4} parent=5 // pred_fallthru
      _
  $region6: #{_lambda_.4} parent=0 // loop_footer
    %s15 = sadd.s32 1, %s11
  $region7: #{_lambda_.4} parent=0 // loop_footer_branch
    %10 = sbr.rel target = $region3
  $region8: #{_lambda_.4} parent=0 // loop_exit
    _

// kernel: _lambda_.5
$region0: #{_lambda_.5}
  #allocation0 [shape = 'u32[]', space=smem, size = 0x4, offset = 0x4, fixed_abs, tag = 'smem constant byte address 0x4 - core index']
  #allocation1 [shape = 'u32[144,128]{1,0:T(1,128)}', space=vmem, size = 0x12000, scoped, tag = 'internal scratch']
  #allocation2 [shape = 'f32[8,128]{1,0:T(8,128)}', space=vmem, size = 0x1000, scoped, tag = 'scratch operand']
  #allocation3 [shape = 'f32[16,128]{1,0:T(8,128)}', space=vmem, size = 0x2000, scoped, tag = 'scratch operand']
  %s0 = inlined_call_operand.vmem [shape: f32[2,8,128], index: 0, kind: input, shape index: {}]
  %s1 = inlined_call_operand.vmem [shape: f32[16,16], index: 1, kind: input, shape index: {}]
  %s2 = inlined_call_operand.vmem [shape: f32[16,1], index: 2, kind: input, shape index: {}]
  %s3 = inlined_call_operand.vmem [shape: f32[16,32], index: 3, kind: input, shape index: {}]
  %s4 = inlined_call_operand.vmem [shape: f32[16,1], index: 4, kind: input, shape index: {}]
  %s5 = inlined_call_operand.vmem [shape: f32[16,8], index: 5, kind: input, shape index: {}]
  %s6 = inlined_call_operand.vmem [shape: f32[16,1], index: 6, kind: input, shape index: {}]
  %s7 = inlined_call_operand.hbm [shape: f32[2,16,128], index: 7, kind: output, shape index: {}]
  %s8 = sld [smem:[#allocation0]]
  $region65: #{_lambda_.5} parent=0
    _
  %s10 = ssub.s32 1, %s8
  %s11 = scalar_select 0, %s10, %s8
  $region1: #{_lambda_.5} parent=0
    #allocation4 [shape = 'u8[16384]{0}', space=vmem, size = 0x4000, scoped, tag = 'output window, operand 0']
    #allocation5 [shape = 's32[2]{0}', space=sflag, size = 0x8, scoped, tag = 'scoped memory for _lambda_.5']
    %12 = vsyncpa [#allocation5], 0
    %s13 = scalar_lea.sflag [#allocation5], 1
    %14 = vsyncpa %s13, 0
    loop: start=0, step=1, limit=4
    $region2: #{_lambda_.5} parent=1 // loop_pre_header
      _
    $region3: #{_lambda_.5} parent=1 // loop_header
      %s16 = sphi 0, %s20
      %p17 = scmp.ge.s32.totalorder %s16, 4
      %s23 = sphi 0, %s35
      %s24 = sphi 0, %s31
      %s25 = sphi 0, %s23
      %s26 = sphi 0, %s24
      %s27 = sphi 0, %s25
      %s28 = sphi 0, %s26
      %s40 = sphi 0, %s42
      %s43 = sphi 0, %s40
      %s44 = sphi 0, %s43
      %s60 = sphi 0, %s44
      %s64 = sphi 0, %s64
      %s66 = sphi 0, %s64
      %s67 = sphi 0, %s66
      %s81 = sphi 0, %s67
      %s85 = sphi 0, %s85
      %s87 = sphi 0, %s85
      %s88 = sphi 0, %s87
      %s102 = sphi 0, %s88
      %s106 = sphi 0, %s106
      %s108 = sphi 0, %s106
      %s109 = sphi 0, %s108
      %s123 = sphi 0, %s109
      %s127 = sphi 0, %s127
      %s129 = sphi 0, %s127
      %s130 = sphi 0, %s129
      %s144 = sphi 0, %s130
      %s148 = sphi 0, %s148
      %s150 = sphi 0, %s148
      %s151 = sphi 0, %s150
      %s165 = sphi 0, %s151
      %s169 = sphi 0, %s169
      %s171 = sphi 0, %s169
      %s172 = sphi 0, %s171
      %s186 = sphi 0, %s172
      %s194 = sphi 0, %s196
      %s197 = sphi 0, %s194
      %s198 = sphi 0, %s197
      %s214 = sphi 0, %s198
    $region4: #{_lambda_.5} parent=1 // loop_header_branch
      %19 = sbr.rel (%p17) target = $region8
    $region5: #{_lambda_.5} parent=1 // loop_body
      %s21 = ssub.s32 %s16, 1
      %s22 = ssub.s32 %s16, 2
      %s29 = sadd.s32 1, %s24
      %p30 = scmp.ge.s32.totalorder %s29, 1
      %s31 = scalar_select %p30, 0, %s29
      %s32 = sadd.s32 1, %s23
      %s33 = scalar_select %p30, %s32, %s23
      %p34 = scmp.ge.s32.totalorder %s33, 2
      %s35 = scalar_select %p34, 0, %s33
      %s36 = ssub.s32 %s23, %s35
      %s37 = ssub.s32 %s24, %s31
      %s38 = sor.u32 %s36, %s37
      %p39 = scmp.eq.s32.totalorder %s38, 0
      %s41 = sadd.s32 %s40, 1
      %s42 = scalar_select %p39, %s40, %s41
      %p45 = pneg %p39
      %p46 = scmp.eq.s32.totalorder %s16, 1
      %p47 = por %p45, %p46
      %p48 = scmp.ne.s32.totalorder %s40, %s43
      %p49 = scmp.eq.s32.totalorder %s16, 0
      %p50 = por %p48, %p49
      %p51 = scmp.ne.s32.totalorder %s40, %s43
      %p52 = scmp.eq.s32.totalorder %s21, 1
      %p53 = por %p51, %p52
      %p54 = scmp.ne.s32.totalorder %s43, %s44
      %p55 = scmp.eq.s32.totalorder %s21, 0
      %p56 = por %p54, %p55
      %p57 = scmp.ne.s32.totalorder %s43, %s44
      %p58 = scmp.eq.s32.totalorder %s22, 1
      %p59 = por %p57, %p58
      %p61 = scmp.ne.s32.totalorder %s44, %s60
      %p62 = scmp.eq.s32.totalorder %s22, 0
      %p63 = por %p61, %p62
      %s65 = sadd.s32 %s64, 1
      %p68 = scmp.eq.s32.totalorder %s16, 1
      %p69 = scmp.ne.s32.totalorder %s64, %s66
      %p70 = scmp.eq.s32.totalorder %s16, 0
      %p71 = por %p69, %p70
      %p72 = scmp.ne.s32.totalorder %s64, %s66
      %p73 = scmp.eq.s32.totalorder %s21, 1
      %p74 = por %p72, %p73
      %p75 = scmp.ne.s32.totalorder %s66, %s67
      %p76 = scmp.eq.s32.totalorder %s21, 0
      %p77 = por %p75, %p76
      %p78 = scmp.ne.s32.totalorder %s66, %s67
      %p79 = scmp.eq.s32.totalorder %s22, 1
      %p80 = por %p78, %p79
      %p82 = scmp.ne.s32.totalorder %s67, %s81
      %p83 = scmp.eq.s32.totalorder %s22, 0
      %p84 = por %p82, %p83
      %s86 = sadd.s32 %s85, 1
      %p89 = scmp.eq.s32.totalorder %s16, 1
      %p90 = scmp.ne.s32.totalorder %s85, %s87
      %p91 = scmp.eq.s32.totalorder %s16, 0
      %p92 = por %p90, %p91
      %p93 = scmp.ne.s32.totalorder %s85, %s87
      %p94 = scmp.eq.s32.totalorder %s21, 1
      %p95 = por %p93, %p94
      %p96 = scmp.ne.s32.totalorder %s87, %s88
      %p97 = scmp.eq.s32.totalorder %s21, 0
      %p98 = por %p96, %p97
      %p99 = scmp.ne.s32.totalorder %s87, %s88
      %p100 = scmp.eq.s32.totalorder %s22, 1
      %p101 = por %p99, %p100
      %p103 = scmp.ne.s32.totalorder %s88, %s102
      %p104 = scmp.eq.s32.totalorder %s22, 0
      %p105 = por %p103, %p104
      %s107 = sadd.s32 %s106, 1
      %p110 = scmp.eq.s32.totalorder %s16, 1
      %p111 = scmp.ne.s32.totalorder %s106, %s108
      %p112 = scmp.eq.s32.totalorder %s16, 0
      %p113 = por %p111, %p112
      %p114 = scmp.ne.s32.totalorder %s106, %s108
      %p115 = scmp.eq.s32.totalorder %s21, 1
      %p116 = por %p114, %p115
      %p117 = scmp.ne.s32.totalorder %s108, %s109
      %p118 = scmp.eq.s32.totalorder %s21, 0
      %p119 = por %p117, %p118
      %p120 = scmp.ne.s32.totalorder %s108, %s109
      %p121 = scmp.eq.s32.totalorder %s22, 1
      %p122 = por %p120, %p121
      %p124 = scmp.ne.s32.totalorder %s109, %s123
      %p125 = scmp.eq.s32.totalorder %s22, 0
      %p126 = por %p124, %p125
      %s128 = sadd.s32 %s127, 1
      %p131 = scmp.eq.s32.totalorder %s16, 1
      %p132 = scmp.ne.s32.totalorder %s127, %s129
      %p133 = scmp.eq.s32.totalorder %s16, 0
      %p134 = por %p132, %p133
      %p135 = scmp.ne.s32.totalorder %s127, %s129
      %p136 = scmp.eq.s32.totalorder %s21, 1
      %p137 = por %p135, %p136
      %p138 = scmp.ne.s32.totalorder %s129, %s130
      %p139 = scmp.eq.s32.totalorder %s21, 0
      %p140 = por %p138, %p139
      %p141 = scmp.ne.s32.totalorder %s129, %s130
      %p142 = scmp.eq.s32.totalorder %s22, 1
      %p143 = por %p141, %p142
      %p145 = scmp.ne.s32.totalorder %s130, %s144
      %p146 = scmp.eq.s32.totalorder %s22, 0
      %p147 = por %p145, %p146
      %s149 = sadd.s32 %s148, 1
      %p152 = scmp.eq.s32.totalorder %s16, 1
      %p153 = scmp.ne.s32.totalorder %s148, %s150
      %p154 = scmp.eq.s32.totalorder %s16, 0
      %p155 = por %p153, %p154
      %p156 = scmp.ne.s32.totalorder %s148, %s150
      %p157 = scmp.eq.s32.totalorder %s21, 1
      %p158 = por %p156, %p157
      %p159 = scmp.ne.s32.totalorder %s150, %s151
      %p160 = scmp.eq.s32.totalorder %s21, 0
      %p161 = por %p159, %p160
      %p162 = scmp.ne.s32.totalorder %s150, %s151
      %p163 = scmp.eq.s32.totalorder %s22, 1
      %p164 = por %p162, %p163
      %p166 = scmp.ne.s32.totalorder %s151, %s165
      %p167 = scmp.eq.s32.totalorder %s22, 0
      %p168 = por %p166, %p167
      %s170 = sadd.s32 %s169, 1
      %p173 = scmp.eq.s32.totalorder %s16, 1
      %p174 = scmp.ne.s32.totalorder %s169, %s171
      %p175 = scmp.eq.s32.totalorder %s16, 0
      %p176 = por %p174, %p175
      %p177 = scmp.ne.s32.totalorder %s169, %s171
      %p178 = scmp.eq.s32.totalorder %s21, 1
      %p179 = por %p177, %p178
      %p180 = scmp.ne.s32.totalorder %s171, %s172
      %p181 = scmp.eq.s32.totalorder %s21, 0
      %p182 = por %p180, %p181
      %p183 = scmp.ne.s32.totalorder %s171, %s172
      %p184 = scmp.eq.s32.totalorder %s22, 1
      %p185 = por %p183, %p184
      %p187 = scmp.ne.s32.totalorder %s172, %s186
      %p188 = scmp.eq.s32.totalorder %s22, 0
      %p189 = por %p187, %p188
      %s190 = ssub.s32 %s23, %s35
      %s191 = ssub.s32 %s24, %s31
      %s192 = sor.u32 %s190, %s191
      %p193 = scmp.eq.s32.totalorder %s192, 0
      %s195 = sadd.s32 %s194, 1
      %s196 = scalar_select %p193, %s194, %s195
      %p199 = pneg %p193
      %p200 = scmp.eq.s32.totalorder %s16, 1
      %p201 = por %p199, %p200
      %p202 = scmp.ne.s32.totalorder %s194, %s197
      %p203 = scmp.eq.s32.totalorder %s16, 0
      %p204 = por %p202, %p203
      %p205 = scmp.ne.s32.totalorder %s194, %s197
      %p206 = scmp.eq.s32.totalorder %s21, 1
      %p207 = por %p205, %p206
      %p208 = scmp.ne.s32.totalorder %s197, %s198
      %p209 = scmp.eq.s32.totalorder %s21, 0
      %p210 = por %p208, %p209
      %p211 = scmp.ne.s32.totalorder %s197, %s198
      %p212 = scmp.eq.s32.totalorder %s22, 1
      %p213 = por %p211, %p212
      %p215 = scmp.ne.s32.totalorder %s198, %s214
      %p216 = scmp.eq.s32.totalorder %s22, 0
      %p217 = por %p215, %p216
      %p218 = scmp.le.s32.totalorder 1, %s16
      %p219 = scmp.lt.s32.totalorder %s16, 3
      %p220 = pnand %p218, %p219
      %p221 = pneg %p220
      // Predicated region
      $region9: #{_lambda_.5} parent=5 // pred_check
        _
      $region10: #{_lambda_.5} parent=5 // pred_check_branch
        %223 = sbr.rel (%p220) target = $region12
      $region11: #{_lambda_.5} parent=5 // pred_region
        %s224 = ssub.s32 %s16, 1
        // Predicated region
        $region13: #{_lambda_.5} parent=11 // pred_check
          %p225 = pneg %p77
        $region14: #{_lambda_.5} parent=11 // pred_check_branch
          %227 = sbr.rel (%p225) target = $region16
        $region15: #{_lambda_.5} parent=11 // pred_region
          _
        $region16: #{_lambda_.5} parent=11 // pred_fallthru
          _
        // Predicated region
        $region17: #{_lambda_.5} parent=11 // pred_check
          %p228 = pneg %p98
        $region18: #{_lambda_.5} parent=11 // pred_check_branch
          %230 = sbr.rel (%p228) target = $region20
        $region19: #{_lambda_.5} parent=11 // pred_region
          _
        $region20: #{_lambda_.5} parent=11 // pred_fallthru
          _
        // Predicated region
        $region21: #{_lambda_.5} parent=11 // pred_check
          %p231 = pneg %p119
        $region22: #{_lambda_.5} parent=11 // pred_check_branch
          %233 = sbr.rel (%p231) target = $region24
        $region23: #{_lambda_.5} parent=11 // pred_region
          _
        $region24: #{_lambda_.5} parent=11 // pred_fallthru
          _
        // Predicated region
        $region25: #{_lambda_.5} parent=11 // pred_check
          %p234 = pneg %p140
        $region26: #{_lambda_.5} parent=11 // pred_check_branch
          %236 = sbr.rel (%p234) target = $region28
        $region27: #{_lambda_.5} parent=11 // pred_region
          _
        $region28: #{_lambda_.5} parent=11 // pred_fallthru
          _
        // Predicated region
        $region29: #{_lambda_.5} parent=11 // pred_check
          %p237 = pneg %p161
        $region30: #{_lambda_.5} parent=11 // pred_check_branch
          %239 = sbr.rel (%p237) target = $region32
        $region31: #{_lambda_.5} parent=11 // pred_region
          _
        $region32: #{_lambda_.5} parent=11 // pred_fallthru
          _
        // Predicated region
        $region33: #{_lambda_.5} parent=11 // pred_check
          %p240 = pneg %p182
        $region34: #{_lambda_.5} parent=11 // pred_check_branch
          %242 = sbr.rel (%p240) target = $region36
        $region35: #{_lambda_.5} parent=11 // pred_region
          _
        $region36: #{_lambda_.5} parent=11 // pred_fallthru
          _
      $region12: #{_lambda_.5} parent=5 // pred_fallthru
        _
      %p243 = scmp.lt.s32.totalorder %s16, 2
      // Predicated region
      $region37: #{_lambda_.5} parent=5 // pred_check
        %p244 = pneg %p243
      $region38: #{_lambda_.5} parent=5 // pred_check_branch
        %246 = sbr.rel (%p244) target = $region40
      $region39: #{_lambda_.5} parent=5 // pred_region
        // Predicated region
        $region41: #{_lambda_.5} parent=39 // pred_check
          %p247 = pneg %p50
        $region42: #{_lambda_.5} parent=39 // pred_check_branch
          %249 = sbr.rel (%p247) target = $region44
        $region43: #{_lambda_.5} parent=39 // pred_region
          %p250 = scmp.lt.s32.totalorder %s23, 1
          %s251 = scalar_select %p250, %s23, 1
          %p252 = scmp.lt.s32.totalorder %s24, 0
          %s253 = scalar_select %p252, %s24, 0
          %s254 = sadd.s32 %s253, %s251
          %s255 = smul.addr %s254, 8
          %s256 = scalar_lea.vmem %s0, %s255
        $region44: #{_lambda_.5} parent=39 // pred_fallthru
          _
      $region40: #{_lambda_.5} parent=5 // pred_fallthru
        _
      %p257 = scmp.le.s32.totalorder 1, %s16
      %p258 = scmp.lt.s32.totalorder %s16, 3
      %p259 = pnand %p257, %p258
      %p260 = pneg %p259
      // Predicated region
      $region45: #{_lambda_.5} parent=5 // pred_check
        _
      $region46: #{_lambda_.5} parent=5 // pred_check_branch
        %262 = sbr.rel (%p259) target = $region48
      $region47: #{_lambda_.5} parent=5 // pred_region
        %s263 = ssub.s32 %s16, 1
        %p264 = scmp.lt.s32.totalorder %s25, 1
        %s265 = scalar_select %p264, %s25, 1
        %p266 = scmp.lt.s32.totalorder %s26, 0
        %s267 = scalar_select %p266, %s26, 0
        %s268 = sadd.s32 %s267, %s265
        %s269 = smul.addr %s268, 8
        %s270 = scalar_lea.vmem %s0, %s269
        %p271 = pneg %p56
        %p272 = pneg %p53
        %p273 = pneg %p77
        %p274 = pneg %p74
        %p275 = pneg %p98
        %p276 = pneg %p95
        %p277 = pneg %p119
        %p278 = pneg %p116
        %p279 = pneg %p140
        %p280 = pneg %p137
        %p281 = pneg %p161
        %p282 = pneg %p158
        %p283 = pneg %p182
        %p284 = pneg %p179
        %p285 = pneg %p210
        %p286 = pneg %p207
        %s287 = sand.u32 %s197, 1
        %s288 = scalar_lea.sflag [#allocation5], %s287
        %s289 = sand.u32 %s197, 1
        %s290 = smul.addr %s289, 16
        %s291 = scalar_lea.vmem [#allocation4], %s290
        %p292 = scmp.lt.s32.totalorder %s25, 1
        %s293 = scalar_select %p292, %s25, 1
        %p294 = scmp.lt.s32.totalorder %s26, 0
        %s295 = scalar_select %p294, %s26, 0
        %s296 = sadd.s32 %s295, %s293
        %s297 = smul.addr %s296, 8
        %s298 = scalar_lea.vmem %s0, %s297
        %p299 = scmp.eq.s32.totalorder %s26, 0
        // Predicated region
        $region49: #{_lambda_.5} parent=47 // pred_check
          %p300 = pneg %p299
        $region50: #{_lambda_.5} parent=47 // pred_check_branch
          %302 = sbr.rel (%p300) target = $region52
        $region51: #{_lambda_.5} parent=47 // pred_region
          %303 = vst [vmem:[#allocation2] sm:$0xff] 0.0
          %304 = vst [vmem:[#allocation3] sm:$0xff] 0.0
          %305 = vst [vmem:[#allocation3 + $0x8] sm:$0xff] 0.0
        $region52: #{_lambda_.5} parent=47 // pred_fallthru
          _
        %v306 = vld [vmem:[%s298] sm:$0xff]
        %v307 = vld [vmem:[#allocation2] sm:$0xff]
        %308 = vst [vmem:[#allocation2] sm:$0xff] %v306
        %310 = vrot.lane.b32.xlu0 %v306, 124
        %v311 = vpop.permute.xlu0 %310
        %v312 = vld [vmem:[%s1] sm:$0xff]
        %v313 = vld [vmem:[%s1 + $0x8] sm:$0xff]
        %v314 = vld [vmem:[%s2] sm:$0xff]
        %v315 = vld [vmem:[%s2 + $0x8] sm:$0xff]
        %317 = vset.pattern.permute.xlu0 0
        %318 = vperm.xlu0 %317, %v314
        %v319 = vpop.permute.xlu0 %318
        %322 = vset.pattern.permute.xlu0 0
        %323 = vperm.xlu0 %322, %v315
        %v324 = vpop.permute.xlu0 %323
        %327 = vrot.lane.b32.xlu0 %v307, 4
        %v328 = vpop.permute.xlu0 %327
        %329 = vrot.lane.b32.xlu0 %v306, 4
        %v330 = vpop.permute.xlu0 %329
        %331 = vrot.lane.b32.xlu0 %v311, 4
        %v332 = vpop.permute.xlu0 %331
        %vm333 = vcmask 31744
        %v334 = vsel %vm333, %v328, %v330
        %vm337 = vcmask 130048
        %v339 = vsel %vm337, %v312, 0
        %v342 = vsel %vm337, %v313, 0
        %344 = vmatprep.subr.mxu0 0.0
        %345 = vmatpush1.msra.mxu0 %v334
        %346 = vmatprep.subr.mxu0 0.0
        %347 = vmatpush1.msra.mxu0 %v332
        %348 = vmatprep.subr.mxu0 0.0
        %349 = vmatpush1.msra.mxu0 0.0
        %350 = vmatprep.subr.mxu0 0.0
        %351 = vmatpush1.msra.mxu0 0.0
        %352 = vmatprep.subr.mxu0 0.0
        %353 = vmatpush1.msra.mxu0 0.0
        %354 = vmatprep.subr.mxu0 0.0
        %355 = vmatpush1.msra.mxu0 0.0
        %356 = vmatprep.subr.mxu0 0.0
        %357 = vmatpush1.msra.mxu0 0.0
        %358 = vmatprep.subr.mxu0 0.0
        %359 = vmatpush1.msra.mxu0 0.0
        %360 = vmatprep.subr.mxu0 0.0
        %361 = vmatpush1.msra.mxu0 0.0
        %362 = vmatprep.subr.mxu0 0.0
        %363 = vmatpush1.msra.mxu0 0.0
        %364 = vmatprep.subr.mxu0 0.0
        %365 = vmatpush1.msra.mxu0 0.0
        %366 = vmatprep.subr.mxu0 0.0
        %367 = vmatpush1.msra.mxu0 0.0
        %368 = vmatprep.subr.mxu0 0.0
        %369 = vmatpush1.msra.mxu0 0.0
        %370 = vmatprep.subr.mxu0 0.0
        %371 = vmatpush1.msra.mxu0 0.0
        %372 = vmatprep.subr.mxu0 0.0
        %373 = vmatpush1.msra.mxu0 0.0
        %374 = vmatprep.subr.mxu0 0.0
        %375 = vmatpush1.msra.mxu0 0.0
        %376 = vmatprep.subr.mxu0 0.0
        %377 = vmatpush1.msra.mxu0 0.0
        %378 = vmatprep.subr.mxu0 0.0
        %379 = vmatpush1.msra.mxu0 0.0
        %380 = vmatprep.subr.mxu0 0.0
        %381 = vmatpush1.msra.mxu0 0.0
        %382 = vmatprep.subr.mxu0 0.0
        %383 = vmatpush1.msra.mxu0 0.0
        %384 = vmatprep.subr.mxu0 0.0
        %385 = vmatpush1.msra.mxu0 0.0
        %386 = vmatprep.subr.mxu0 0.0
        %387 = vmatpush1.msra.mxu0 0.0
        %388 = vmatprep.subr.mxu0 0.0
        %389 = vmatpush1.msra.mxu0 0.0
        %390 = vmatprep.subr.mxu0 0.0
        %391 = vmatpush1.msra.mxu0 0.0
        %392 = vmatprep.subr.mxu0 0.0
        %393 = vmatpush1.msra.mxu0 0.0
        %394 = vmatprep.subr.mxu0 0.0
        %395 = vmatpush1.msra.mxu0 0.0
        %396 = vmatprep.subr.mxu0 0.0
        %397 = vmatpush1.msra.mxu0 0.0
        %398 = vmatprep.subr.mxu0 0.0
        %399 = vmatpush1.msra.mxu0 0.0
        %400 = vmatprep.subr.mxu0 0.0
        %401 = vmatpush1.msra.mxu0 0.0
        %402 = vmatprep.subr.mxu0 0.0
        %403 = vmatpush1.msra.mxu0 0.0
        %404 = vmatprep.subr.mxu0 0.0
        %405 = vmatpush1.msra.mxu0 0.0
        %406 = vmatprep.subr.mxu0 0.0
        %407 = vmatpush1.msra.mxu0 0.0
        %408 = vmatprep.mubr.f32.mxu0 0.0
        %409 = vmatmul.mubr.f32.gmra.mrb[0].mxu0 %v339
        %v410 = vpop.f32.mrb[0].mxu0
        %v411 = vadd.f32 %v319, %v410
        %v412 = vpop.f32.mrb[0].mxu0
        %413 = vmatprep.mubr.f32.mxu0 0.0
        %414 = vmatmul.mubr.f32.gmra.mrb[0].mxu0 %v342
        %v415 = vpop.f32.mrb[0].mxu0
        %v416 = vadd.f32 %v324, %v415
        %v417 = vpop.f32.mrb[0].mxu0
        %418 = vdwg.mxu0
        %v419 = vmax.f32 %v411, 0.0
        %v420 = vmax.f32 %v416, 0.0
        %v421 = vld [vmem:[#allocation3] sm:$0xff]
        %v422 = vld [vmem:[#allocation3 + $0x8] sm:$0xff]
        %423 = vst [vmem:[#allocation3] sm:$0xff] %v419
        %424 = vst [vmem:[#allocation3 + $0x8] sm:$0xff] %v420
        %427 = vrot.lane.b32.xlu0 %v419, 124
        %v428 = vpop.permute.xlu0 %427
        %429 = vrot.lane.b32.xlu0 %v420, 124
        %v430 = vpop.permute.xlu0 %429
        %v431 = vld [vmem:[%s3] sm:$0xff]
        %v432 = vld [vmem:[%s3 + $0x8] sm:$0xff]
        %v433 = vld [vmem:[%s4] sm:$0xff]
        %v434 = vld [vmem:[%s4 + $0x8] sm:$0xff]
        %436 = vset.pattern.permute.xlu0 0
        %437 = vperm.xlu0 %436, %v433
        %v438 = vpop.permute.xlu0 %437
        %441 = vset.pattern.permute.xlu0 0
        %442 = vperm.xlu0 %441, %v434
        %v443 = vpop.permute.xlu0 %442
        %447 = vrot.lane.b32.xlu0 %v421, 4
        %v448 = vpop.permute.xlu0 %447
        %449 = vrot.lane.b32.xlu0 %v419, 4
        %v450 = vpop.permute.xlu0 %449
        %451 = vrot.lane.b32.xlu0 %v422, 4
        %v452 = vpop.permute.xlu0 %451
        %453 = vrot.lane.b32.xlu0 %v420, 4
        %v454 = vpop.permute.xlu0 %453
        %455 = vrot.lane.b32.xlu0 %v428, 4
        %v456 = vpop.permute.xlu0 %455
        %457 = vrot.lane.b32.xlu0 %v430, 4
        %v458 = vpop.permute.xlu0 %457
        %v459 = vsel %vm333, %v448, %v450
        %v460 = vsel %vm333, %v452, %v454
        %vm465 = vcmask 261120
        %v467 = vsel %vm465, %v431, 0
        %v470 = vsel %vm465, %v432, 0
        %472 = vmatprep.subr.mxu0 0.0
        %473 = vmatpush1.msra.mxu0 %v459
        %474 = vmatprep.subr.mxu0 0.0
        %475 = vmatpush1.msra.mxu0 %v460
        %476 = vmatprep.subr.mxu0 0.0
        %477 = vmatpush1.msra.mxu0 %v456
        %478 = vmatprep.subr.mxu0 0.0
        %479 = vmatpush1.msra.mxu0 %v458
        %480 = vmatprep.subr.mxu0 0.0
        %481 = vmatpush1.msra.mxu0 0.0
        %482 = vmatprep.subr.mxu0 0.0
        %483 = vmatpush1.msra.mxu0 0.0
        %484 = vmatprep.subr.mxu0 0.0
        %485 = vmatpush1.msra.mxu0 0.0
        %486 = vmatprep.subr.mxu0 0.0
        %487 = vmatpush1.msra.mxu0 0.0
        %488 = vmatprep.subr.mxu0 0.0
        %489 = vmatpush1.msra.mxu0 0.0
        %490 = vmatprep.subr.mxu0 0.0
        %491 = vmatpush1.msra.mxu0 0.0
        %492 = vmatprep.subr.mxu0 0.0
        %493 = vmatpush1.msra.mxu0 0.0
        %494 = vmatprep.subr.mxu0 0.0
        %495 = vmatpush1.msra.mxu0 0.0
        %496 = vmatprep.subr.mxu0 0.0
        %497 = vmatpush1.msra.mxu0 0.0
        %498 = vmatprep.subr.mxu0 0.0
        %499 = vmatpush1.msra.mxu0 0.0
        %500 = vmatprep.subr.mxu0 0.0
        %501 = vmatpush1.msra.mxu0 0.0
        %502 = vmatprep.subr.mxu0 0.0
        %503 = vmatpush1.msra.mxu0 0.0
        %504 = vmatprep.subr.mxu0 0.0
        %505 = vmatpush1.msra.mxu0 0.0
        %506 = vmatprep.subr.mxu0 0.0
        %507 = vmatpush1.msra.mxu0 0.0
        %508 = vmatprep.subr.mxu0 0.0
        %509 = vmatpush1.msra.mxu0 0.0
        %510 = vmatprep.subr.mxu0 0.0
        %511 = vmatpush1.msra.mxu0 0.0
        %512 = vmatprep.subr.mxu0 0.0
        %513 = vmatpush1.msra.mxu0 0.0
        %514 = vmatprep.subr.mxu0 0.0
        %515 = vmatpush1.msra.mxu0 0.0
        %516 = vmatprep.subr.mxu0 0.0
        %517 = vmatpush1.msra.mxu0 0.0
        %518 = vmatprep.subr.mxu0 0.0
        %519 = vmatpush1.msra.mxu0 0.0
        %520 = vmatprep.subr.mxu0 0.0
        %521 = vmatpush1.msra.mxu0 0.0
        %522 = vmatprep.subr.mxu0 0.0
        %523 = vmatpush1.msra.mxu0 0.0
        %524 = vmatprep.subr.mxu0 0.0
        %525 = vmatpush1.msra.mxu0 0.0
        %526 = vmatprep.subr.mxu0 0.0
        %527 = vmatpush1.msra.mxu0 0.0
        %528 = vmatprep.subr.mxu0 0.0
        %529 = vmatpush1.msra.mxu0 0.0
        %530 = vmatprep.subr.mxu0 0.0
        %531 = vmatpush1.msra.mxu0 0.0
        %532 = vmatprep.subr.mxu0 0.0
        %533 = vmatpush1.msra.mxu0 0.0
        %534 = vmatprep.subr.mxu0 0.0
        %535 = vmatpush1.msra.mxu0 0.0
        %536 = vmatprep.mubr.f32.mxu0 0.0
        %537 = vmatmul.mubr.f32.gmra.mrb[0].mxu0 %v467
        %v538 = vpop.f32.mrb[0].mxu0
        %v539 = vadd.f32 %v438, %v538
        %v540 = vpop.f32.mrb[0].mxu0
        %541 = vmatprep.mubr.f32.mxu0 0.0
        %542 = vmatmul.mubr.f32.gmra.mrb[0].mxu0 %v470
        %v543 = vpop.f32.mrb[0].mxu0
        %v544 = vadd.f32 %v443, %v543
        %v545 = vpop.f32.mrb[0].mxu0
        %546 = vdwg.mxu0
        %v547 = vmax.f32 %v539, 0.0
        %v548 = vmax.f32 %v544, 0.0
        %v549 = vld [vmem:[%s5] sm:$0xff]
        %v550 = vld [vmem:[%s5 + $0x8] sm:$0xff]
        %v551 = vld [vmem:[%s6] sm:$0xff]
        %v552 = vld [vmem:[%s6 + $0x8] sm:$0xff]
        %554 = vset.pattern.permute.xlu0 0
        %555 = vperm.xlu0 %554, %v551
        %v556 = vpop.permute.xlu0 %555
        %559 = vset.pattern.permute.xlu0 0
        %560 = vperm.xlu0 %559, %v552
        %v561 = vpop.permute.xlu0 %560
        %vm563 = vcmask 64512
        %v565 = vsel %vm563, %v549, 0
        %v568 = vsel %vm563, %v550, 0
        %570 = vmatprep.subr.mxu0 0.0
        %571 = vmatpush1.msra.mxu0 %v306
        %572 = vmatprep.subr.mxu0 0.0
        %573 = vmatpush1.msra.mxu0 0.0
        %574 = vmatprep.subr.mxu0 0.0
        %575 = vmatpush1.msra.mxu0 0.0
        %576 = vmatprep.subr.mxu0 0.0
        %577 = vmatpush1.msra.mxu0 0.0
        %578 = vmatprep.subr.mxu0 0.0
        %579 = vmatpush1.msra.mxu0 0.0
        %580 = vmatprep.subr.mxu0 0.0
        %581 = vmatpush1.msra.mxu0 0.0
        %582 = vmatprep.subr.mxu0 0.0
        %583 = vmatpush1.msra.mxu0 0.0
        %584 = vmatprep.subr.mxu0 0.0
        %585 = vmatpush1.msra.mxu0 0.0
        %586 = vmatprep.subr.mxu0 0.0
        %587 = vmatpush1.msra.mxu0 0.0
        %588 = vmatprep.subr.mxu0 0.0
        %589 = vmatpush1.msra.mxu0 0.0
        %590 = vmatprep.subr.mxu0 0.0
        %591 = vmatpush1.msra.mxu0 0.0
        %592 = vmatprep.subr.mxu0 0.0
        %593 = vmatpush1.msra.mxu0 0.0
        %594 = vmatprep.subr.mxu0 0.0
        %595 = vmatpush1.msra.mxu0 0.0
        %596 = vmatprep.subr.mxu0 0.0
        %597 = vmatpush1.msra.mxu0 0.0
        %598 = vmatprep.subr.mxu0 0.0
        %599 = vmatpush1.msra.mxu0 0.0
        %600 = vmatprep.subr.mxu0 0.0
        %601 = vmatpush1.msra.mxu0 0.0
        %602 = vmatprep.subr.mxu0 0.0
        %603 = vmatpush1.msra.mxu0 0.0
        %604 = vmatprep.subr.mxu0 0.0
        %605 = vmatpush1.msra.mxu0 0.0
        %606 = vmatprep.subr.mxu0 0.0
        %607 = vmatpush1.msra.mxu0 0.0
        %608 = vmatprep.subr.mxu0 0.0
        %609 = vmatpush1.msra.mxu0 0.0
        %610 = vmatprep.subr.mxu0 0.0
        %611 = vmatpush1.msra.mxu0 0.0
        %612 = vmatprep.subr.mxu0 0.0
        %613 = vmatpush1.msra.mxu0 0.0
        %614 = vmatprep.subr.mxu0 0.0
        %615 = vmatpush1.msra.mxu0 0.0
        %616 = vmatprep.subr.mxu0 0.0
        %617 = vmatpush1.msra.mxu0 0.0
        %618 = vmatprep.subr.mxu0 0.0
        %619 = vmatpush1.msra.mxu0 0.0
        %620 = vmatprep.subr.mxu0 0.0
        %621 = vmatpush1.msra.mxu0 0.0
        %622 = vmatprep.subr.mxu0 0.0
        %623 = vmatpush1.msra.mxu0 0.0
        %624 = vmatprep.subr.mxu0 0.0
        %625 = vmatpush1.msra.mxu0 0.0
        %626 = vmatprep.subr.mxu0 0.0
        %627 = vmatpush1.msra.mxu0 0.0
        %628 = vmatprep.subr.mxu0 0.0
        %629 = vmatpush1.msra.mxu0 0.0
        %630 = vmatprep.subr.mxu0 0.0
        %631 = vmatpush1.msra.mxu0 0.0
        %632 = vmatprep.subr.mxu0 0.0
        %633 = vmatpush1.msra.mxu0 0.0
        %634 = vmatprep.mubr.f32.mxu0 0.0
        %635 = vmatmul.mubr.f32.gmra.mrb[0].mxu0 %v565
        %v636 = vpop.f32.mrb[0].mxu0
        %v637 = vadd.f32 %v556, %v636
        %v638 = vpop.f32.mrb[0].mxu0
        %639 = vmatprep.mubr.f32.mxu0 0.0
        %640 = vmatmul.mubr.f32.gmra.mrb[0].mxu0 %v568
        %v641 = vpop.f32.mrb[0].mxu0
        %v642 = vadd.f32 %v561, %v641
        %v643 = vpop.f32.mrb[0].mxu0
        %644 = vdwg.mxu0
        %v645 = vadd.f32 %v547, %v637
        %v646 = vadd.f32 %v548, %v642
        %v647 = vmax.f32 %v645, 0.0
        %v648 = vmax.f32 %v646, 0.0
        %649 = vst [vmem:[%s291] sm:$0xff] %v647
        %650 = vst [vmem:[%s291 + $0x8] sm:$0xff] %v648
        %s651 = sand.u32 %s197, 1
        %s652 = scalar_lea.sflag [#allocation5], %s651
        %s653 = sand.u32 %s197, 1
        %s654 = smul.addr %s653, 16
        %s655 = scalar_lea.vmem [#allocation4], %s654
        // Predicated region
        $region53: #{_lambda_.5} parent=47 // pred_check
          %p656 = pneg %p207
        $region54: #{_lambda_.5} parent=47 // pred_check_branch
          %658 = sbr.rel (%p656) target = $region56
        $region55: #{_lambda_.5} parent=47 // pred_region
          %s660 = ssub.s32 256, 256
          %661 = vsyncadd %s652, %s660
          %s662 = smul.addr %s25, 2
          %s663 = sadd.s32 %s26, %s662
          %s664 = smul.addr %s663, 128
          %s665 = scalar_lea.hbm %s7, %s664
          %s666 = sshll.u32 %s655, 4
          %s667 = int_to_ptr.vmem [resolvable:$true] %s666
          %672 = dma.vmem_to_hbm [thread:$0]  %s667, 256, %s665, %s652, 128, 128, 8
        $region56: #{_lambda_.5} parent=47 // pred_fallthru
          _
      $region48: #{_lambda_.5} parent=5 // pred_fallthru
        _
      %p673 = scmp.le.s32.totalorder 2, %s16
      // Predicated region
      $region57: #{_lambda_.5} parent=5 // pred_check
        %p674 = pneg %p673
      $region58: #{_lambda_.5} parent=5 // pred_check_branch
        %676 = sbr.rel (%p674) target = $region60
      $region59: #{_lambda_.5} parent=5 // pred_region
        %s677 = ssub.s32 %s16, 2
        // Predicated region
        $region61: #{_lambda_.5} parent=59 // pred_check
          %p678 = pneg %p213
        $region62: #{_lambda_.5} parent=59 // pred_check_branch
          %680 = sbr.rel (%p678) target = $region64
        $region63: #{_lambda_.5} parent=59 // pred_region
          %s681 = sand.u32 %s198, 1
          %s682 = scalar_lea.sflag [#allocation5], %s681
          %s683 = sand.u32 %s198, 1
          %s684 = smul.addr %s683, 16
          %s685 = scalar_lea.vmem [#allocation4], %s684
          %686 = dma.done %s682, 256
        $region64: #{_lambda_.5} parent=59 // pred_fallthru
          _
      $region60: #{_lambda_.5} parent=5 // pred_fallthru
        _
    $region6: #{_lambda_.5} parent=1 // loop_footer
      %s20 = sadd.s32 1, %s16
    $region7: #{_lambda_.5} parent=1 // loop_footer_branch
      %15 = sbr.rel target = $region3
    $region8: #{_lambda_.5} parent=1 // loop_exit
      _
    %687 = vsyncpa [#allocation5], 1
    %s688 = scalar_lea.sflag [#allocation5], 1
    %689 = vsyncpa %s688, 1

</llo_original>
